<compile_context>
chip_gen: v7x
topology: tpu7x:2x2x1
jax: 0.10.0
libtpu: 0.0.40
codegen_flags: <defaults>
</compile_context>

<pallas_src>
import functools

import numpy as np
import jax
import jax.numpy as jnp
from jax.experimental import pallas as pl
from jax.experimental.pallas import tpu as pltpu


# ----------------------------------------------------------------------------
# Model configuration (small shapes consistent with the PyTorch module)
# ----------------------------------------------------------------------------
NUM_FEATURES = 3                 # xyz per mesh vertex
N_LAYERS = 2
FILTERS_ENC = [NUM_FEATURES, 16, 32]          # num_features inserted at front
FILTERS_DEC = list(reversed(FILTERS_ENC))     # [32, 16, 3]
K_ORDER = [3, 3]                 # Chebyshev polynomial order per layer
N_NODES = [64, 32]               # nodes per encoder level
N_NODES_DOWN = [32, 16]          # nodes after each downsample
LATENT_DIM = 8
IS_VARIATIONAL = True


# ----------------------------------------------------------------------------
# In-kernel helpers
# ----------------------------------------------------------------------------
def _cheb(x, s, w_ref, b, K):
    """ChebConv_Coma: out = sum_k T_k @ W_k (+ b);
    T_0 = x, T_1 = S x, T_k = 2 S T_{k-1} - T_{k-2}."""
    f32 = jnp.float32
    out = jnp.dot(x, w_ref[0], preferred_element_type=f32)
    if K > 1:
        t0 = x
        t1 = jnp.dot(s, x, preferred_element_type=f32)
        out = out + jnp.dot(t1, w_ref[1], preferred_element_type=f32)
        for k in range(2, K):
            t2 = 2.0 * jnp.dot(s, t1, preferred_element_type=f32) - t0
            out = out + jnp.dot(t2, w_ref[k], preferred_element_type=f32)
            t0, t1 = t1, t2
    if b is not None:                      # static: last decoder layer has bias=None
        out = out + b
    return out


# ----------------------------------------------------------------------------
# Pallas kernels (3 fused stages)
# ----------------------------------------------------------------------------
def _encoder_kernel(x_ref, a0_ref, a1_ref, d0_ref, d1_ref,
                    w0_ref, b0_ref, w1_ref, b1_ref, o_ref, *, k_orders):
    """Per batch element: [cheb -> pool(down) -> ReLU] x 2, all in VMEM."""
    f32 = jnp.float32
    x = x_ref[0].astype(f32)                                                   # (64, 3)
    x = _cheb(x, a0_ref[...], w0_ref, b0_ref[...], k_orders[0])                # (64, 16)
    x = jnp.maximum(jnp.dot(d0_ref[...], x, preferred_element_type=f32), 0.0)  # (32, 16)
    x = _cheb(x, a1_ref[...], w1_ref, b1_ref[...], k_orders[1])                # (32, 32)
    x = jnp.maximum(jnp.dot(d1_ref[...], x, preferred_element_type=f32), 0.0)  # (16, 32)
    o_ref[0] = x.astype(o_ref.dtype)


def _bottleneck_kernel(x_ref, wmv_ref, bmv_ref, wdl_ref, bdl_ref,
                       muvar_ref, h_ref, *, latent_dim):
    """Fused enc_lin_mu/enc_lin_var + dec_lin (inference: z = mu)."""
    f32 = jnp.float32
    x = x_ref[...].astype(f32)                                     # (B, 512)
    # x @ [W_mu; W_var].T + [b_mu; b_var]   (PyTorch nn.Linear layout)
    muvar = jax.lax.dot_general(
        x, wmv_ref[...], dimension_numbers=(((1,), (1,)), ((), ())),
        preferred_element_type=f32) + bmv_ref[...]                 # (B, 2*latent)
    muvar_ref[...] = muvar.astype(muvar_ref.dtype)
    # TODO(synk): variational sampling (training mode) would draw eps ~ N(0,1);
    # we evaluate in inference mode, so z = mu (matches the PyTorch `else` branch).
    z = muvar[:, :latent_dim]                                      # (B, latent)
    h = jax.lax.dot_general(
        z, wdl_ref[...], dimension_numbers=(((1,), (1,)), ((), ())),
        preferred_element_type=f32) + bdl_ref[...]                 # (B, 512)
    h_ref[...] = h.astype(h_ref.dtype)


def _decoder_kernel(h_ref, a1_ref, a0_ref, u0_ref, u1_ref,
                    w0_ref, b0_ref, w1_ref, o_ref, *, k_orders):
    """Per batch element: [ReLU -> pool(up) -> cheb] x 2, all in VMEM."""
    f32 = jnp.float32
    x = h_ref[0].astype(f32)                                                   # (16, 32)
    x = jnp.maximum(x, 0.0)
    x = jnp.dot(u0_ref[...], x, preferred_element_type=f32)                    # (32, 32)
    x = _cheb(x, a1_ref[...], w0_ref, b0_ref[...], k_orders[0])                # (32, 16)
    x = jnp.maximum(x, 0.0)
    x = jnp.dot(u1_ref[...], x, preferred_element_type=f32)                    # (64, 16)
    x = _cheb(x, a0_ref[...], w1_ref, None, k_orders[1])                       # (64, 3)
    o_ref[0] = x.astype(o_ref.dtype)


# ----------------------------------------------------------------------------
# pallas_call wrappers
# ----------------------------------------------------------------------------
def _const_spec(shape):
    """Full-array block whose index does not change across grid steps."""
    zeros = (0,) * len(shape)
    return pl.BlockSpec(shape, lambda b: zeros)


def encoder_graph(x, params, mats):
    B = x.shape[0]
    dt = x.dtype
    kernel = functools.partial(_encoder_kernel, k_orders=tuple(K_ORDER))
    consts = (mats["A_enc"][0], mats["A_enc"][1], mats["down"][0], mats["down"][1],
              params["enc_conv"][0]["W"], params["enc_conv"][0]["b"],
              params["enc_conv"][1]["W"], params["enc_conv"][1]["b"])
    in_specs = [pl.BlockSpec((1, N_NODES[0], NUM_FEATURES), lambda b: (b, 0, 0))]
    in_specs += [_const_spec(c.shape) for c in consts]
    return pl.pallas_call(
        kernel,
        out_shape=jax.ShapeDtypeStruct((B, N_NODES_DOWN[1], FILTERS_ENC[2]), dt),
        grid=(B,),
        in_specs=in_specs,
        out_specs=pl.BlockSpec((1, N_NODES_DOWN[1], FILTERS_ENC[2]),
                               lambda b: (b, 0, 0)),
        compiler_params=pltpu.CompilerParams(dimension_semantics=("parallel",)),
    )(x, *consts)


def bottleneck_lin(x_flat, params):
    B, nfeat = x_flat.shape
    dt = x_flat.dtype
    if IS_VARIATIONAL:
        wmv = jnp.concatenate([params["enc_lin_mu"]["W"],
                               params["enc_lin_var"]["W"]], axis=0)
        bmv = jnp.concatenate([params["enc_lin_mu"]["b"],
                               params["enc_lin_var"]["b"]], axis=1)
    else:
        wmv, bmv = params["enc_lin_mu"]["W"], params["enc_lin_mu"]["b"]
    out_dim = wmv.shape[0]
    kernel = functools.partial(_bottleneck_kernel, latent_dim=LATENT_DIM)
    muvar, h = pl.pallas_call(
        kernel,
        out_shape=(jax.ShapeDtypeStruct((B, out_dim), dt),
                   jax.ShapeDtypeStruct((B, nfeat), dt)),
        grid=(1,),
        in_specs=[_const_spec((B, nfeat)),
                  _const_spec(wmv.shape), _const_spec(bmv.shape),
                  _const_spec(params["dec_lin"]["W"].shape),
                  _const_spec(params["dec_lin"]["b"].shape)],
        out_specs=(_const_spec((B, out_dim)), _const_spec((B, nfeat))),
        compiler_params=pltpu.CompilerParams(dimension_semantics=("arbitrary",)),
    )(x_flat, wmv, bmv, params["dec_lin"]["W"], params["dec_lin"]["b"])
    return muvar, h


def decoder_graph(h, params, mats):
    B = h.shape[0]
    dt = h.dtype
    # Same node-major layout as the PyTorch x.reshape(batch, -1, in_channels);
    # free metadata reshape on the host side.
    h3 = h.reshape(B, N_NODES_DOWN[1], FILTERS_DEC[0])
    kernel = functools.partial(_decoder_kernel, k_orders=tuple(K_ORDER))
    consts = (mats["A_enc"][1], mats["A_enc"][0], mats["up"][0], mats["up"][1],
              params["dec_conv"][0]["W"], params["dec_conv"][0]["b"],
              params["dec_conv"][1]["W"])            # last ChebConv: bias=None
    in_specs = [pl.BlockSpec((1, N_NODES_DOWN[1], FILTERS_DEC[0]),
                             lambda b: (b, 0, 0))]
    in_specs += [_const_spec(c.shape) for c in consts]
    return pl.pallas_call(
        kernel,
        out_shape=jax.ShapeDtypeStruct((B, N_NODES[0], FILTERS_DEC[2]), dt),
        grid=(B,),
        in_specs=in_specs,
        out_specs=pl.BlockSpec((1, N_NODES[0], FILTERS_DEC[2]), lambda b: (b, 0, 0)),
        compiler_params=pltpu.CompilerParams(dimension_semantics=("parallel",)),
    )(h3, *consts)


def autoencoder_forward(x, params, mats):
    B = x.shape[0]
    x_enc = encoder_graph(x, params, mats)            # (B, 16, 32)
    flat = x_enc.reshape(B, -1)                       # free metadata reshape
    muvar, h = bottleneck_lin(flat, params)
    mu = muvar[:, :LATENT_DIM]
    log_var = muvar[:, LATENT_DIM:] if IS_VARIATIONAL else None
    x_hat = decoder_graph(h, params, mats)
    return x_hat, {"mu": mu, "log_var": log_var}


# ----------------------------------------------------------------------------
# Graph / matrix construction (glue, plain numpy)
# ----------------------------------------------------------------------------
def ring_adjacency(n, hops=2):
    A = np.zeros((n, n), np.float32)
    for d in range(1, hops + 1):
        for i in range(n):
            A[i, (i + d) % n] = 1.0
            A[i, (i - d) % n] = 1.0
    return A


def normalize_adjacency(A):
    """ChebConv_Coma.norm: S = D^{-1/2} A D^{-1/2} (no self loops)."""
    deg = A.sum(axis=1)
    dinv = np.where(deg > 0, deg ** -0.5, 0.0).astype(np.float32)
    return (dinv[:, None] * A * dinv[None, :]).astype(np.float32)


def build_matrices():
    A_enc = [normalize_adjacency(ring_adjacency(n)) for n in N_NODES]   # [A64, A32]
    D, U = [], []
    for n_in, n_out in zip(N_NODES, N_NODES_DOWN):
        m_down = np.zeros((n_out, n_in), np.float32)      # keep every other node
        for i in range(n_out):
            m_down[i, 2 * i] = 1.0
        D.append(m_down)
        m_up = np.zeros((n_in, n_out), np.float32)        # replicate coarse node
        for i in range(n_in):
            m_up[i, i // 2] = 1.0
        U.append(m_up)
    return {
        "A_enc": [jnp.asarray(a) for a in A_enc],
        "down": [jnp.asarray(m) for m in D],
        "up": [jnp.asarray(m) for m in reversed(U)],      # decoder uses reversed list
    }


# ----------------------------------------------------------------------------
# Parameters
# ----------------------------------------------------------------------------
def init_params(key):
    n_feat_before_z = N_NODES_DOWN[-1] * FILTERS_ENC[-1]      # 16 * 32 = 512
    keys = iter(jax.random.split(key, 32))

    def normal(shape, std):
        return std * jax.random.normal(next(keys), shape, jnp.float32)

    params = {"enc_conv": [], "dec_conv": []}
    for i in range(N_LAYERS):
        params["enc_conv"].append({
            "W": normal((K_ORDER[i], FILTERS_ENC[i], FILTERS_ENC[i + 1]), 0.1),
            "b": normal((1, FILTERS_ENC[i + 1]), 0.01),
        })
    for i in range(N_LAYERS):
        has_bias = i < N_LAYERS - 1            # ChebConv_Coma: cheb_dec[-1].bias = None
        params["dec_conv"].append({
            "W": normal((K_ORDER[i], FILTERS_DEC[i], FILTERS_DEC[i + 1]), 0.1),
            "b": normal((1, FILTERS_DEC[i + 1]), 0.01) if has_bias else None,
        })
    params["enc_lin_mu"] = {"W": normal((LATENT_DIM, n_feat_before_z), 0.001),
                            "b": normal((1, LATENT_DIM), 0.01)}
    params["enc_lin_var"] = {"W": normal((LATENT_DIM, n_feat_before_z), 0.0001),
                             "b": normal((1, LATENT_DIM), 0.01)}
    params["dec_lin"] = {"W": normal((n_feat_before_z, LATENT_DIM), 0.1),
                         "b": normal((1, n_feat_before_z), 0.01)}
    return params


# ----------------------------------------------------------------------------
# Main
# ----------------------------------------------------------------------------
if __name__ == "__main__":
    key = jax.random.PRNGKey(0)
    k_param, k_input = jax.random.split(key)

    mats = build_matrices()
    params = init_params(k_param)

    B = 2
    x = jax.random.normal(k_input, (B, N_NODES[0], NUM_FEATURES), jnp.float32)

    x_hat, bottleneck_out = autoencoder_forward(x, params, mats)
    x_hat = jax.block_until_ready(x_hat)
    mu = jax.block_until_ready(bottleneck_out["mu"])
    log_var = jax.block_until_ready(bottleneck_out["log_var"])

    assert x_hat.shape == (B, N_NODES[0], NUM_FEATURES)
    assert mu.shape == (B, LATENT_DIM) and log_var.shape == (B, LATENT_DIM)
    assert bool(jnp.all(jnp.isfinite(x_hat)))
    print("KERNEL_OK")
</pallas_src>

<mosaic_0001>
module attributes {stable_mosaic.version = 11 : i64} {
  func.func @_encoder_kernel(%arg0: i32, %arg1: memref<1x64x3xf32, #tpu.memory_space<vmem>>, %arg2: memref<64x64xf32, #tpu.memory_space<vmem>>, %arg3: memref<32x32xf32, #tpu.memory_space<vmem>>, %arg4: memref<32x64xf32, #tpu.memory_space<vmem>>, %arg5: memref<16x32xf32, #tpu.memory_space<vmem>>, %arg6: memref<3x3x16xf32, #tpu.memory_space<vmem>>, %arg7: memref<1x16xf32, #tpu.memory_space<vmem>>, %arg8: memref<3x16x32xf32, #tpu.memory_space<vmem>>, %arg9: memref<1x32xf32, #tpu.memory_space<vmem>>, %arg10: memref<1x16x32xf32, #tpu.memory_space<vmem>>) attributes {dimension_semantics = [#tpu.dimension_semantics<parallel>], iteration_bounds = array<i64: 2>, scalar_prefetch = 0 : i64, scratch_operands = 0 : i64, tpu.core_type = #tpu.core_type<tc>, window_params = [{transform_indices = @transform_0, window_bounds = array<i64: 1, 64, 3>}, {pipeline_mode = #tpu.pipeline_mode<synchronous>, transform_indices = @transform_1, window_bounds = array<i64: 64, 64>}, {pipeline_mode = #tpu.pipeline_mode<synchronous>, transform_indices = @transform_2, window_bounds = array<i64: 32, 32>}, {pipeline_mode = #tpu.pipeline_mode<synchronous>, transform_indices = @transform_3, window_bounds = array<i64: 32, 64>}, {pipeline_mode = #tpu.pipeline_mode<synchronous>, transform_indices = @transform_4, window_bounds = array<i64: 16, 32>}, {pipeline_mode = #tpu.pipeline_mode<synchronous>, transform_indices = @transform_5, window_bounds = array<i64: 3, 3, 16>}, {pipeline_mode = #tpu.pipeline_mode<synchronous>, transform_indices = @transform_6, window_bounds = array<i64: 1, 16>}, {pipeline_mode = #tpu.pipeline_mode<synchronous>, transform_indices = @transform_7, window_bounds = array<i64: 3, 16, 32>}, {pipeline_mode = #tpu.pipeline_mode<synchronous>, transform_indices = @transform_8, window_bounds = array<i64: 1, 32>}, {transform_indices = @transform_9, window_bounds = array<i64: 1, 16, 32>}]} {
    %c0 = arith.constant 0 : index
    %c0_0 = arith.constant 0 : index
    %c0_1 = arith.constant 0 : index
    %0 = vector.load %arg1[%c0, %c0_0, %c0_1] : memref<1x64x3xf32, #tpu.memory_space<vmem>>, vector<1x64x3xf32>
    %1 = vector.shape_cast %0 : vector<1x64x3xf32> to vector<64x3xf32>
    %c0_2 = arith.constant 0 : index
    %c0_3 = arith.constant 0 : index
    %2 = vector.load %arg2[%c0_2, %c0_3] : memref<64x64xf32, #tpu.memory_space<vmem>>, vector<64x64xf32>
    %c0_4 = arith.constant 0 : index
    %c0_5 = arith.constant 0 : index
    %3 = vector.load %arg7[%c0_4, %c0_5] : memref<1x16xf32, #tpu.memory_space<vmem>>, vector<1x16xf32>
    %c0_6 = arith.constant 0 : index
    %c0_7 = arith.constant 0 : index
    %c0_8 = arith.constant 0 : index
    %4 = vector.load %arg6[%c0_6, %c0_7, %c0_8] : memref<3x3x16xf32, #tpu.memory_space<vmem>>, vector<1x3x16xf32>
    %5 = vector.shape_cast %4 : vector<1x3x16xf32> to vector<3x16xf32>
    %cst = arith.constant dense<0.000000e+00> : vector<64x16xf32>
    %6 = tpu.matmul %1, %5, %cst {dimension_numbers = #tpu.dot_dimension_numbers<[1], [0], [0], [1], [0, 0, 1, 1], [], []>} : vector<64x3xf32>, vector<3x16xf32>, vector<64x16xf32> -> vector<64x16xf32>
    %cst_9 = arith.constant dense<0.000000e+00> : vector<64x3xf32>
    %7 = tpu.matmul %2, %1, %cst_9 {dimension_numbers = #tpu.dot_dimension_numbers<[1], [0], [0], [1], [0, 0, 1, 1], [], []>} : vector<64x64xf32>, vector<64x3xf32>, vector<64x3xf32> -> vector<64x3xf32>
    %c1 = arith.constant 1 : index
    %c0_10 = arith.constant 0 : index
    %c0_11 = arith.constant 0 : index
    %8 = vector.load %arg6[%c1, %c0_10, %c0_11] : memref<3x3x16xf32, #tpu.memory_space<vmem>>, vector<1x3x16xf32>
    %9 = vector.shape_cast %8 : vector<1x3x16xf32> to vector<3x16xf32>
    %cst_12 = arith.constant dense<0.000000e+00> : vector<64x16xf32>
    %10 = tpu.matmul %7, %9, %cst_12 {dimension_numbers = #tpu.dot_dimension_numbers<[1], [0], [0], [1], [0, 0, 1, 1], [], []>} : vector<64x3xf32>, vector<3x16xf32>, vector<64x16xf32> -> vector<64x16xf32>
    %11 = arith.addf %6, %10 : vector<64x16xf32>
    %cst_13 = arith.constant dense<0.000000e+00> : vector<64x3xf32>
    %12 = tpu.matmul %2, %7, %cst_13 {dimension_numbers = #tpu.dot_dimension_numbers<[1], [0], [0], [1], [0, 0, 1, 1], [], []>} : vector<64x64xf32>, vector<64x3xf32>, vector<64x3xf32> -> vector<64x3xf32>
    %cst_14 = arith.constant 2.000000e+00 : f32
    %13 = vector.broadcast %cst_14 : f32 to vector<64x3xf32>
    %14 = arith.mulf %13, %12 : vector<64x3xf32>
    %15 = arith.subf %14, %1 : vector<64x3xf32>
    %c2 = arith.constant 2 : index
    %c0_15 = arith.constant 0 : index
    %c0_16 = arith.constant 0 : index
    %16 = vector.load %arg6[%c2, %c0_15, %c0_16] : memref<3x3x16xf32, #tpu.memory_space<vmem>>, vector<1x3x16xf32>
    %17 = vector.shape_cast %16 : vector<1x3x16xf32> to vector<3x16xf32>
    %cst_17 = arith.constant dense<0.000000e+00> : vector<64x16xf32>
    %18 = tpu.matmul %15, %17, %cst_17 {dimension_numbers = #tpu.dot_dimension_numbers<[1], [0], [0], [1], [0, 0, 1, 1], [], []>} : vector<64x3xf32>, vector<3x16xf32>, vector<64x16xf32> -> vector<64x16xf32>
    %19 = arith.addf %11, %18 : vector<64x16xf32>
    %20 = vector.broadcast %3 : vector<1x16xf32> to vector<64x16xf32>
    %21 = arith.addf %19, %20 : vector<64x16xf32>
    %c0_18 = arith.constant 0 : index
    %c0_19 = arith.constant 0 : index
    %22 = vector.load %arg4[%c0_18, %c0_19] : memref<32x64xf32, #tpu.memory_space<vmem>>, vector<32x64xf32>
    %cst_20 = arith.constant dense<0.000000e+00> : vector<32x16xf32>
    %23 = tpu.matmul %22, %21, %cst_20 {dimension_numbers = #tpu.dot_dimension_numbers<[1], [0], [0], [1], [0, 0, 1, 1], [], []>} : vector<32x64xf32>, vector<64x16xf32>, vector<32x16xf32> -> vector<32x16xf32>
    %cst_21 = arith.constant 0.000000e+00 : f32
    %24 = vector.broadcast %cst_21 : f32 to vector<32x16xf32>
    %25 = arith.maximumf %23, %24 : vector<32x16xf32>
    %c0_22 = arith.constant 0 : index
    %c0_23 = arith.constant 0 : index
    %26 = vector.load %arg3[%c0_22, %c0_23] : memref<32x32xf32, #tpu.memory_space<vmem>>, vector<32x32xf32>
    %c0_24 = arith.constant 0 : index
    %c0_25 = arith.constant 0 : index
    %27 = vector.load %arg9[%c0_24, %c0_25] : memref<1x32xf32, #tpu.memory_space<vmem>>, vector<1x32xf32>
    %c0_26 = arith.constant 0 : index
    %c0_27 = arith.constant 0 : index
    %c0_28 = arith.constant 0 : index
    %28 = vector.load %arg8[%c0_26, %c0_27, %c0_28] : memref<3x16x32xf32, #tpu.memory_space<vmem>>, vector<1x16x32xf32>
    %29 = vector.shape_cast %28 : vector<1x16x32xf32> to vector<16x32xf32>
    %cst_29 = arith.constant dense<0.000000e+00> : vector<32x32xf32>
    %30 = tpu.matmul %25, %29, %cst_29 {dimension_numbers = #tpu.dot_dimension_numbers<[1], [0], [0], [1], [0, 0, 1, 1], [], []>} : vector<32x16xf32>, vector<16x32xf32>, vector<32x32xf32> -> vector<32x32xf32>
    %cst_30 = arith.constant dense<0.000000e+00> : vector<32x16xf32>
    %31 = tpu.matmul %26, %25, %cst_30 {dimension_numbers = #tpu.dot_dimension_numbers<[1], [0], [0], [1], [0, 0, 1, 1], [], []>} : vector<32x32xf32>, vector<32x16xf32>, vector<32x16xf32> -> vector<32x16xf32>
    %c1_31 = arith.constant 1 : index
    %c0_32 = arith.constant 0 : index
    %c0_33 = arith.constant 0 : index
    %32 = vector.load %arg8[%c1_31, %c0_32, %c0_33] : memref<3x16x32xf32, #tpu.memory_space<vmem>>, vector<1x16x32xf32>
    %33 = vector.shape_cast %32 : vector<1x16x32xf32> to vector<16x32xf32>
    %cst_34 = arith.constant dense<0.000000e+00> : vector<32x32xf32>
    %34 = tpu.matmul %31, %33, %cst_34 {dimension_numbers = #tpu.dot_dimension_numbers<[1], [0], [0], [1], [0, 0, 1, 1], [], []>} : vector<32x16xf32>, vector<16x32xf32>, vector<32x32xf32> -> vector<32x32xf32>
    %35 = arith.addf %30, %34 : vector<32x32xf32>
    %cst_35 = arith.constant dense<0.000000e+00> : vector<32x16xf32>
    %36 = tpu.matmul %26, %31, %cst_35 {dimension_numbers = #tpu.dot_dimension_numbers<[1], [0], [0], [1], [0, 0, 1, 1], [], []>} : vector<32x32xf32>, vector<32x16xf32>, vector<32x16xf32> -> vector<32x16xf32>
    %cst_36 = arith.constant 2.000000e+00 : f32
    %37 = vector.broadcast %cst_36 : f32 to vector<32x16xf32>
    %38 = arith.mulf %37, %36 : vector<32x16xf32>
    %39 = arith.subf %38, %25 : vector<32x16xf32>
    %c2_37 = arith.constant 2 : index
    %c0_38 = arith.constant 0 : index
    %c0_39 = arith.constant 0 : index
    %40 = vector.load %arg8[%c2_37, %c0_38, %c0_39] : memref<3x16x32xf32, #tpu.memory_space<vmem>>, vector<1x16x32xf32>
    %41 = vector.shape_cast %40 : vector<1x16x32xf32> to vector<16x32xf32>
    %cst_40 = arith.constant dense<0.000000e+00> : vector<32x32xf32>
    %42 = tpu.matmul %39, %41, %cst_40 {dimension_numbers = #tpu.dot_dimension_numbers<[1], [0], [0], [1], [0, 0, 1, 1], [], []>} : vector<32x16xf32>, vector<16x32xf32>, vector<32x32xf32> -> vector<32x32xf32>
    %43 = arith.addf %35, %42 : vector<32x32xf32>
    %44 = vector.broadcast %27 : vector<1x32xf32> to vector<32x32xf32>
    %45 = arith.addf %43, %44 : vector<32x32xf32>
    %c0_41 = arith.constant 0 : index
    %c0_42 = arith.constant 0 : index
    %46 = vector.load %arg5[%c0_41, %c0_42] : memref<16x32xf32, #tpu.memory_space<vmem>>, vector<16x32xf32>
    %cst_43 = arith.constant dense<0.000000e+00> : vector<16x32xf32>
    %47 = tpu.matmul %46, %45, %cst_43 {dimension_numbers = #tpu.dot_dimension_numbers<[1], [0], [0], [1], [0, 0, 1, 1], [], []>} : vector<16x32xf32>, vector<32x32xf32>, vector<16x32xf32> -> vector<16x32xf32>
    %cst_44 = arith.constant 0.000000e+00 : f32
    %48 = vector.broadcast %cst_44 : f32 to vector<16x32xf32>
    %49 = arith.maximumf %47, %48 : vector<16x32xf32>
    %c0_45 = arith.constant 0 : index
    %c0_46 = arith.constant 0 : index
    %c0_47 = arith.constant 0 : index
    %50 = vector.load %arg10[%c0_45, %c0_46, %c0_47] : memref<1x16x32xf32, #tpu.memory_space<vmem>>, vector<1x16x32xf32>
    %51 = vector.shape_cast %50 : vector<1x16x32xf32> to vector<16x32xf32>
    %52 = vector.shape_cast %49 : vector<16x32xf32> to vector<1x16x32xf32>
    tpu.vector_store %arg10[%c0_45, %c0_46, %c0_47], %52 {strides = array<i32>} : memref<1x16x32xf32, #tpu.memory_space<vmem>>, vector<1x16x32xf32>,
    return
  }
  func.func @transform_0(%arg0: i32) -> (i32, i32, i32) {
    %c0_i32 = arith.constant 0 : i32
    %c0_i32_0 = arith.constant 0 : i32
    %c0_i32_1 = arith.constant 0 : i32
    return %arg0, %c0_i32, %c0_i32_0 : i32, i32, i32
  }
  func.func @transform_1(%arg0: i32) -> (i32, i32) {
    %c0_i32 = arith.constant 0 : i32
    %c0_i32_0 = arith.constant 0 : i32
    %c0_i32_1 = arith.constant 0 : i32
    return %c0_i32, %c0_i32_0 : i32, i32
  }
  func.func @transform_2(%arg0: i32) -> (i32, i32) {
    %c0_i32 = arith.constant 0 : i32
    %c0_i32_0 = arith.constant 0 : i32
    %c0_i32_1 = arith.constant 0 : i32
    return %c0_i32, %c0_i32_0 : i32, i32
  }
  func.func @transform_3(%arg0: i32) -> (i32, i32) {
    %c0_i32 = arith.constant 0 : i32
    %c0_i32_0 = arith.constant 0 : i32
    %c0_i32_1 = arith.constant 0 : i32
    return %c0_i32, %c0_i32_0 : i32, i32
  }
  func.func @transform_4(%arg0: i32) -> (i32, i32) {
    %c0_i32 = arith.constant 0 : i32
    %c0_i32_0 = arith.constant 0 : i32
    %c0_i32_1 = arith.constant 0 : i32
    return %c0_i32, %c0_i32_0 : i32, i32
  }
  func.func @transform_5(%arg0: i32) -> (i32, i32, i32) {
    %c0_i32 = arith.constant 0 : i32
    %c0_i32_0 = arith.constant 0 : i32
    %c0_i32_1 = arith.constant 0 : i32
    %c0_i32_2 = arith.constant 0 : i32
    return %c0_i32, %c0_i32_0, %c0_i32_1 : i32, i32, i32
  }
  func.func @transform_6(%arg0: i32) -> (i32, i32) {
    %c0_i32 = arith.constant 0 : i32
    %c0_i32_0 = arith.constant 0 : i32
    %c0_i32_1 = arith.constant 0 : i32
    return %c0_i32, %c0_i32_0 : i32, i32
  }
  func.func @transform_7(%arg0: i32) -> (i32, i32, i32) {
    %c0_i32 = arith.constant 0 : i32
    %c0_i32_0 = arith.constant 0 : i32
    %c0_i32_1 = arith.constant 0 : i32
    %c0_i32_2 = arith.constant 0 : i32
    return %c0_i32, %c0_i32_0, %c0_i32_1 : i32, i32, i32
  }
  func.func @transform_8(%arg0: i32) -> (i32, i32) {
    %c0_i32 = arith.constant 0 : i32
    %c0_i32_0 = arith.constant 0 : i32
    %c0_i32_1 = arith.constant 0 : i32
    return %c0_i32, %c0_i32_0 : i32, i32
  }
  func.func @transform_9(%arg0: i32) -> (i32, i32, i32) {
    %c0_i32 = arith.constant 0 : i32
    %c0_i32_0 = arith.constant 0 : i32
    %c0_i32_1 = arith.constant 0 : i32
    return %arg0, %c0_i32, %c0_i32_0 : i32, i32, i32
  }
}

</mosaic_0001>

<llo_original>
// kernel: tpu_custom_call.1
$region0: #{tpu_custom_call.1}
  #allocation0 [shape = 'u32[]', space=smem, size = 0x4, offset = 0x4, fixed_abs, tag = 'smem constant byte address 0x4 - core index']
  #allocation1 [shape = 'u32[144,128]{1,0:T(1,128)}', space=vmem, size = 0x12000, scoped, tag = 'internal scratch']
  %s0 = inlined_call_operand.vmem [shape: f32[2,64,3], index: 0, kind: input, shape index: {}]
  %s1 = inlined_call_operand.vmem [shape: f32[64,64], index: 1, kind: input, shape index: {}]
  %s2 = inlined_call_operand.hbm [shape: f32[32,32], index: 2, kind: input, shape index: {}]
  %s3 = inlined_call_operand.vmem [shape: f32[32,64], index: 3, kind: input, shape index: {}]
  %s4 = inlined_call_operand.hbm [shape: f32[16,32], index: 4, kind: input, shape index: {}]
  %s5 = inlined_call_operand.hbm [shape: f32[3,3,16], index: 5, kind: input, shape index: {}]
  %s6 = inlined_call_operand.vmem [shape: f32[1,16], index: 6, kind: input, shape index: {}]
  %s7 = inlined_call_operand.vmem [shape: f32[3,16,32], index: 7, kind: input, shape index: {}]
  %s8 = inlined_call_operand.vmem [shape: f32[1,32], index: 8, kind: input, shape index: {}]
  %s9 = inlined_call_operand.hbm [shape: f32[2,16,32], index: 9, kind: output, shape index: {}]
  %s10 = sld [smem:[#allocation0]]
  $region81: #{tpu_custom_call.1} parent=0
    _
  %s12 = ssub.s32 1, %s10
  %s13 = scalar_select 0, %s12, %s10
  $region1: #{tpu_custom_call.1} parent=0
    #allocation2 [shape = 'u8[16384]{0}', space=vmem, size = 0x4000, scoped, tag = 'input window, operand 2, single buffered']
    #allocation3 [shape = 's32[2]{0}', space=sflag, size = 0x8, scoped, tag = 'scoped memory for tpu_custom_call.1']
    #allocation4 [shape = 's32[2]{0}', space=sflag, size = 0x8, scoped, tag = 'scoped memory for tpu_custom_call.1']
    #allocation5 [shape = 'u8[8192]{0}', space=vmem, size = 0x2000, scoped, tag = 'input window, operand 4, single buffered']
    #allocation6 [shape = 's32[1]{0}', space=sflag, size = 0x4, scoped, tag = 'scoped memory for tpu_custom_call.1']
    #allocation7 [shape = 'u8[6144]{0}', space=vmem, size = 0x1800, scoped, tag = 'input window, operand 5, single buffered']
    #allocation8 [shape = 'u8[16384]{0}', space=vmem, size = 0x4000, scoped, tag = 'output window, operand 0']
    %14 = vsyncpa [#allocation3], 0
    %15 = vsyncpa [#allocation6], 0
    %16 = vsyncpa [#allocation4], 0
    %s17 = scalar_lea.sflag [#allocation4], 1
    %18 = vsyncpa %s17, 0
    loop: start=0, step=1, limit=4
    $region2: #{tpu_custom_call.1} parent=1 // loop_pre_header
      _
    $region3: #{tpu_custom_call.1} parent=1 // loop_header
      %s20 = sphi 0, %s24
      %p21 = scmp.ge.s32.totalorder %s20, 4
      %s30 = sphi 0, %s32
      %s33 = sphi 0, %s30
      %s34 = sphi 0, %s33
      %s50 = sphi 0, %s34
      %s54 = sphi 0, %s54
      %s56 = sphi 0, %s54
      %s57 = sphi 0, %s56
      %s71 = sphi 0, %s57
      %s75 = sphi 0, %s75
      %s77 = sphi 0, %s75
      %s78 = sphi 0, %s77
      %s92 = sphi 0, %s78
      %s96 = sphi 0, %s96
      %s98 = sphi 0, %s96
      %s99 = sphi 0, %s98
      %s113 = sphi 0, %s99
      %s117 = sphi 0, %s117
      %s119 = sphi 0, %s117
      %s120 = sphi 0, %s119
      %s134 = sphi 0, %s120
      %s138 = sphi 0, %s138
      %s140 = sphi 0, %s138
      %s141 = sphi 0, %s140
      %s155 = sphi 0, %s141
      %s159 = sphi 0, %s159
      %s161 = sphi 0, %s159
      %s162 = sphi 0, %s161
      %s176 = sphi 0, %s162
      %s180 = sphi 0, %s180
      %s182 = sphi 0, %s180
      %s183 = sphi 0, %s182
      %s197 = sphi 0, %s183
      %s201 = sphi 0, %s201
      %s203 = sphi 0, %s201
      %s204 = sphi 0, %s203
      %s218 = sphi 0, %s204
      %s224 = sphi 0, %s226
      %s227 = sphi 0, %s224
      %s228 = sphi 0, %s227
      %s244 = sphi 0, %s228
    $region4: #{tpu_custom_call.1} parent=1 // loop_header_branch
      %23 = sbr.rel (%p21) target = $region8
    $region5: #{tpu_custom_call.1} parent=1 // loop_body
      %s25 = ssub.s32 %s20, 1
      %s26 = ssub.s32 %s20, 2
      %s27 = sadd.s32 %s20, 1
      %s28 = ssub.s32 %s20, %s27
      %p29 = scmp.eq.s32.totalorder %s28, 0
      %s31 = sadd.s32 %s30, 1
      %s32 = scalar_select %p29, %s30, %s31
      %p35 = pneg %p29
      %p36 = scmp.eq.s32.totalorder %s20, 1
      %p37 = por %p35, %p36
      %p38 = scmp.ne.s32.totalorder %s30, %s33
      %p39 = scmp.eq.s32.totalorder %s20, 0
      %p40 = por %p38, %p39
      %p41 = scmp.ne.s32.totalorder %s30, %s33
      %p42 = scmp.eq.s32.totalorder %s25, 1
      %p43 = por %p41, %p42
      %p44 = scmp.ne.s32.totalorder %s33, %s34
      %p45 = scmp.eq.s32.totalorder %s25, 0
      %p46 = por %p44, %p45
      %p47 = scmp.ne.s32.totalorder %s33, %s34
      %p48 = scmp.eq.s32.totalorder %s26, 1
      %p49 = por %p47, %p48
      %p51 = scmp.ne.s32.totalorder %s34, %s50
      %p52 = scmp.eq.s32.totalorder %s26, 0
      %p53 = por %p51, %p52
      %s55 = sadd.s32 %s54, 1
      %p58 = scmp.eq.s32.totalorder %s20, 1
      %p59 = scmp.ne.s32.totalorder %s54, %s56
      %p60 = scmp.eq.s32.totalorder %s20, 0
      %p61 = por %p59, %p60
      %p62 = scmp.ne.s32.totalorder %s54, %s56
      %p63 = scmp.eq.s32.totalorder %s25, 1
      %p64 = por %p62, %p63
      %p65 = scmp.ne.s32.totalorder %s56, %s57
      %p66 = scmp.eq.s32.totalorder %s25, 0
      %p67 = por %p65, %p66
      %p68 = scmp.ne.s32.totalorder %s56, %s57
      %p69 = scmp.eq.s32.totalorder %s26, 1
      %p70 = por %p68, %p69
      %p72 = scmp.ne.s32.totalorder %s57, %s71
      %p73 = scmp.eq.s32.totalorder %s26, 0
      %p74 = por %p72, %p73
      %s76 = sadd.s32 %s75, 1
      %p79 = scmp.eq.s32.totalorder %s20, 1
      %p80 = scmp.ne.s32.totalorder %s75, %s77
      %p81 = scmp.eq.s32.totalorder %s20, 0
      %p82 = por %p80, %p81
      %p83 = scmp.ne.s32.totalorder %s75, %s77
      %p84 = scmp.eq.s32.totalorder %s25, 1
      %p85 = por %p83, %p84
      %p86 = scmp.ne.s32.totalorder %s77, %s78
      %p87 = scmp.eq.s32.totalorder %s25, 0
      %p88 = por %p86, %p87
      %p89 = scmp.ne.s32.totalorder %s77, %s78
      %p90 = scmp.eq.s32.totalorder %s26, 1
      %p91 = por %p89, %p90
      %p93 = scmp.ne.s32.totalorder %s78, %s92
      %p94 = scmp.eq.s32.totalorder %s26, 0
      %p95 = por %p93, %p94
      %s97 = sadd.s32 %s96, 1
      %p100 = scmp.eq.s32.totalorder %s20, 1
      %p101 = scmp.ne.s32.totalorder %s96, %s98
      %p102 = scmp.eq.s32.totalorder %s20, 0
      %p103 = por %p101, %p102
      %p104 = scmp.ne.s32.totalorder %s96, %s98
      %p105 = scmp.eq.s32.totalorder %s25, 1
      %p106 = por %p104, %p105
      %p107 = scmp.ne.s32.totalorder %s98, %s99
      %p108 = scmp.eq.s32.totalorder %s25, 0
      %p109 = por %p107, %p108
      %p110 = scmp.ne.s32.totalorder %s98, %s99
      %p111 = scmp.eq.s32.totalorder %s26, 1
      %p112 = por %p110, %p111
      %p114 = scmp.ne.s32.totalorder %s99, %s113
      %p115 = scmp.eq.s32.totalorder %s26, 0
      %p116 = por %p114, %p115
      %s118 = sadd.s32 %s117, 1
      %p121 = scmp.eq.s32.totalorder %s20, 1
      %p122 = scmp.ne.s32.totalorder %s117, %s119
      %p123 = scmp.eq.s32.totalorder %s20, 0
      %p124 = por %p122, %p123
      %p125 = scmp.ne.s32.totalorder %s117, %s119
      %p126 = scmp.eq.s32.totalorder %s25, 1
      %p127 = por %p125, %p126
      %p128 = scmp.ne.s32.totalorder %s119, %s120
      %p129 = scmp.eq.s32.totalorder %s25, 0
      %p130 = por %p128, %p129
      %p131 = scmp.ne.s32.totalorder %s119, %s120
      %p132 = scmp.eq.s32.totalorder %s26, 1
      %p133 = por %p131, %p132
      %p135 = scmp.ne.s32.totalorder %s120, %s134
      %p136 = scmp.eq.s32.totalorder %s26, 0
      %p137 = por %p135, %p136
      %s139 = sadd.s32 %s138, 1
      %p142 = scmp.eq.s32.totalorder %s20, 1
      %p143 = scmp.ne.s32.totalorder %s138, %s140
      %p144 = scmp.eq.s32.totalorder %s20, 0
      %p145 = por %p143, %p144
      %p146 = scmp.ne.s32.totalorder %s138, %s140
      %p147 = scmp.eq.s32.totalorder %s25, 1
      %p148 = por %p146, %p147
      %p149 = scmp.ne.s32.totalorder %s140, %s141
      %p150 = scmp.eq.s32.totalorder %s25, 0
      %p151 = por %p149, %p150
      %p152 = scmp.ne.s32.totalorder %s140, %s141
      %p153 = scmp.eq.s32.totalorder %s26, 1
      %p154 = por %p152, %p153
      %p156 = scmp.ne.s32.totalorder %s141, %s155
      %p157 = scmp.eq.s32.totalorder %s26, 0
      %p158 = por %p156, %p157
      %s160 = sadd.s32 %s159, 1
      %p163 = scmp.eq.s32.totalorder %s20, 1
      %p164 = scmp.ne.s32.totalorder %s159, %s161
      %p165 = scmp.eq.s32.totalorder %s20, 0
      %p166 = por %p164, %p165
      %p167 = scmp.ne.s32.totalorder %s159, %s161
      %p168 = scmp.eq.s32.totalorder %s25, 1
      %p169 = por %p167, %p168
      %p170 = scmp.ne.s32.totalorder %s161, %s162
      %p171 = scmp.eq.s32.totalorder %s25, 0
      %p172 = por %p170, %p171
      %p173 = scmp.ne.s32.totalorder %s161, %s162
      %p174 = scmp.eq.s32.totalorder %s26, 1
      %p175 = por %p173, %p174
      %p177 = scmp.ne.s32.totalorder %s162, %s176
      %p178 = scmp.eq.s32.totalorder %s26, 0
      %p179 = por %p177, %p178
      %s181 = sadd.s32 %s180, 1
      %p184 = scmp.eq.s32.totalorder %s20, 1
      %p185 = scmp.ne.s32.totalorder %s180, %s182
      %p186 = scmp.eq.s32.totalorder %s20, 0
      %p187 = por %p185, %p186
      %p188 = scmp.ne.s32.totalorder %s180, %s182
      %p189 = scmp.eq.s32.totalorder %s25, 1
      %p190 = por %p188, %p189
      %p191 = scmp.ne.s32.totalorder %s182, %s183
      %p192 = scmp.eq.s32.totalorder %s25, 0
      %p193 = por %p191, %p192
      %p194 = scmp.ne.s32.totalorder %s182, %s183
      %p195 = scmp.eq.s32.totalorder %s26, 1
      %p196 = por %p194, %p195
      %p198 = scmp.ne.s32.totalorder %s183, %s197
      %p199 = scmp.eq.s32.totalorder %s26, 0
      %p200 = por %p198, %p199
      %s202 = sadd.s32 %s201, 1
      %p205 = scmp.eq.s32.totalorder %s20, 1
      %p206 = scmp.ne.s32.totalorder %s201, %s203
      %p207 = scmp.eq.s32.totalorder %s20, 0
      %p208 = por %p206, %p207
      %p209 = scmp.ne.s32.totalorder %s201, %s203
      %p210 = scmp.eq.s32.totalorder %s25, 1
      %p211 = por %p209, %p210
      %p212 = scmp.ne.s32.totalorder %s203, %s204
      %p213 = scmp.eq.s32.totalorder %s25, 0
      %p214 = por %p212, %p213
      %p215 = scmp.ne.s32.totalorder %s203, %s204
      %p216 = scmp.eq.s32.totalorder %s26, 1
      %p217 = por %p215, %p216
      %p219 = scmp.ne.s32.totalorder %s204, %s218
      %p220 = scmp.eq.s32.totalorder %s26, 0
      %p221 = por %p219, %p220
      %s222 = ssub.s32 %s20, %s27
      %p223 = scmp.eq.s32.totalorder %s222, 0
      %s225 = sadd.s32 %s224, 1
      %s226 = scalar_select %p223, %s224, %s225
      %p229 = pneg %p223
      %p230 = scmp.eq.s32.totalorder %s20, 1
      %p231 = por %p229, %p230
      %p232 = scmp.ne.s32.totalorder %s224, %s227
      %p233 = scmp.eq.s32.totalorder %s20, 0
      %p234 = por %p232, %p233
      %p235 = scmp.ne.s32.totalorder %s224, %s227
      %p236 = scmp.eq.s32.totalorder %s25, 1
      %p237 = por %p235, %p236
      %p238 = scmp.ne.s32.totalorder %s227, %s228
      %p239 = scmp.eq.s32.totalorder %s25, 0
      %p240 = por %p238, %p239
      %p241 = scmp.ne.s32.totalorder %s227, %s228
      %p242 = scmp.eq.s32.totalorder %s26, 1
      %p243 = por %p241, %p242
      %p245 = scmp.ne.s32.totalorder %s228, %s244
      %p246 = scmp.eq.s32.totalorder %s26, 0
      %p247 = por %p245, %p246
      %p248 = scmp.le.s32.totalorder 1, %s20
      %p249 = scmp.lt.s32.totalorder %s20, 3
      %p250 = pnand %p248, %p249
      %p251 = pneg %p250
      // Predicated region
      $region9: #{tpu_custom_call.1} parent=5 // pred_check
        _
      $region10: #{tpu_custom_call.1} parent=5 // pred_check_branch
        %253 = sbr.rel (%p250) target = $region12
      $region11: #{tpu_custom_call.1} parent=5 // pred_region
        %s254 = ssub.s32 %s20, 1
        // Predicated region
        $region13: #{tpu_custom_call.1} parent=11 // pred_check
          %p255 = pneg %p67
        $region14: #{tpu_custom_call.1} parent=11 // pred_check_branch
          %257 = sbr.rel (%p255) target = $region16
        $region15: #{tpu_custom_call.1} parent=11 // pred_region
          _
        $region16: #{tpu_custom_call.1} parent=11 // pred_fallthru
          _
        // Predicated region
        $region17: #{tpu_custom_call.1} parent=11 // pred_check
          %p258 = pneg %p88
        $region18: #{tpu_custom_call.1} parent=11 // pred_check_branch
          %260 = sbr.rel (%p258) target = $region20
        $region19: #{tpu_custom_call.1} parent=11 // pred_region
          %s262 = ssub.s32 512, 512
          %263 = vsyncadd [#allocation3], %s262
          %s264 = sshll.u32 [#allocation2], 4
          %s265 = int_to_ptr.vmem [resolvable:$true] %s264
          %270 = dma.hbm_to_vmem [thread:$0]  %s2, 512, %s265, [#allocation3], 128, 128, 8
        $region20: #{tpu_custom_call.1} parent=11 // pred_fallthru
          _
        // Predicated region
        $region21: #{tpu_custom_call.1} parent=11 // pred_check
          %p271 = pneg %p109
        $region22: #{tpu_custom_call.1} parent=11 // pred_check_branch
          %273 = sbr.rel (%p271) target = $region24
        $region23: #{tpu_custom_call.1} parent=11 // pred_region
          _
        $region24: #{tpu_custom_call.1} parent=11 // pred_fallthru
          _
        // Predicated region
        $region25: #{tpu_custom_call.1} parent=11 // pred_check
          %p274 = pneg %p130
        $region26: #{tpu_custom_call.1} parent=11 // pred_check_branch
          %276 = sbr.rel (%p274) target = $region28
        $region27: #{tpu_custom_call.1} parent=11 // pred_region
          %s278 = ssub.s32 256, 256
          %279 = vsyncadd [#allocation6], %s278
          %s280 = sshll.u32 [#allocation5], 4
          %s281 = int_to_ptr.vmem [resolvable:$true] %s280
          %286 = dma.hbm_to_vmem [thread:$0]  %s4, 256, %s281, [#allocation6], 128, 128, 8
        $region28: #{tpu_custom_call.1} parent=11 // pred_fallthru
          _
        // Predicated region
        $region29: #{tpu_custom_call.1} parent=11 // pred_check
          %p287 = pneg %p151
        $region30: #{tpu_custom_call.1} parent=11 // pred_check_branch
          %289 = sbr.rel (%p287) target = $region32
        $region31: #{tpu_custom_call.1} parent=11 // pred_region
          %s291 = ssub.s32 192, 192
          %292 = vsyncadd [#allocation6], %s291
          %s293 = sshll.u32 [#allocation7], 4
          %s294 = int_to_ptr.vmem [resolvable:$true] %s293
          %299 = dma.hbm_to_vmem [thread:$0]  %s5, 192, %s294, [#allocation6], 64, 64, 4
        $region32: #{tpu_custom_call.1} parent=11 // pred_fallthru
          _
        // Predicated region
        $region33: #{tpu_custom_call.1} parent=11 // pred_check
          %p300 = pneg %p172
        $region34: #{tpu_custom_call.1} parent=11 // pred_check_branch
          %302 = sbr.rel (%p300) target = $region36
        $region35: #{tpu_custom_call.1} parent=11 // pred_region
          _
        $region36: #{tpu_custom_call.1} parent=11 // pred_fallthru
          _
        // Predicated region
        $region37: #{tpu_custom_call.1} parent=11 // pred_check
          %p303 = pneg %p193
        $region38: #{tpu_custom_call.1} parent=11 // pred_check_branch
          %305 = sbr.rel (%p303) target = $region40
        $region39: #{tpu_custom_call.1} parent=11 // pred_region
          _
        $region40: #{tpu_custom_call.1} parent=11 // pred_fallthru
          _
        // Predicated region
        $region41: #{tpu_custom_call.1} parent=11 // pred_check
          %p306 = pneg %p214
        $region42: #{tpu_custom_call.1} parent=11 // pred_check_branch
          %308 = sbr.rel (%p306) target = $region44
        $region43: #{tpu_custom_call.1} parent=11 // pred_region
          _
        $region44: #{tpu_custom_call.1} parent=11 // pred_fallthru
          _
      $region12: #{tpu_custom_call.1} parent=5 // pred_fallthru
        _
      %p309 = scmp.lt.s32.totalorder %s20, 2
      // Predicated region
      $region45: #{tpu_custom_call.1} parent=5 // pred_check
        %p310 = pneg %p309
      $region46: #{tpu_custom_call.1} parent=5 // pred_check_branch
        %312 = sbr.rel (%p310) target = $region48
      $region47: #{tpu_custom_call.1} parent=5 // pred_region
        // Predicated region
        $region49: #{tpu_custom_call.1} parent=47 // pred_check
          %p313 = pneg %p40
        $region50: #{tpu_custom_call.1} parent=47 // pred_check_branch
          %315 = sbr.rel (%p313) target = $region52
        $region51: #{tpu_custom_call.1} parent=47 // pred_region
          %p316 = scmp.lt.s32.totalorder %s20, 1
          %s317 = scalar_select %p316, %s20, 1
          %s318 = smul.addr %s317, 8
          %s319 = smul.addr %s318, 8
          %s320 = scalar_lea.vmem %s0, %s319
        $region52: #{tpu_custom_call.1} parent=47 // pred_fallthru
          _
      $region48: #{tpu_custom_call.1} parent=5 // pred_fallthru
        _
      %p321 = scmp.le.s32.totalorder 1, %s20
      %p322 = scmp.lt.s32.totalorder %s20, 3
      %p323 = pnand %p321, %p322
      %p324 = pneg %p323
      // Predicated region
      $region53: #{tpu_custom_call.1} parent=5 // pred_check
        _
      $region54: #{tpu_custom_call.1} parent=5 // pred_check_branch
        %326 = sbr.rel (%p323) target = $region56
      $region55: #{tpu_custom_call.1} parent=5 // pred_region
        %s327 = ssub.s32 %s20, 1
        // Predicated region
        $region57: #{tpu_custom_call.1} parent=55 // pred_check
          %p328 = pneg %p88
        $region58: #{tpu_custom_call.1} parent=55 // pred_check_branch
          %330 = sbr.rel (%p328) target = $region60
        $region59: #{tpu_custom_call.1} parent=55 // pred_region
          %331 = dma.done [#allocation3], 512
        $region60: #{tpu_custom_call.1} parent=55 // pred_fallthru
          _
        // Predicated region
        $region61: #{tpu_custom_call.1} parent=55 // pred_check
          %p332 = pneg %p130
        $region62: #{tpu_custom_call.1} parent=55 // pred_check_branch
          %334 = sbr.rel (%p332) target = $region64
        $region63: #{tpu_custom_call.1} parent=55 // pred_region
          %335 = dma.done [#allocation6], 256
        $region64: #{tpu_custom_call.1} parent=55 // pred_fallthru
          _
        // Predicated region
        $region65: #{tpu_custom_call.1} parent=55 // pred_check
          %p336 = pneg %p151
        $region66: #{tpu_custom_call.1} parent=55 // pred_check_branch
          %338 = sbr.rel (%p336) target = $region68
        $region67: #{tpu_custom_call.1} parent=55 // pred_region
          %339 = dma.done [#allocation6], 192
        $region68: #{tpu_custom_call.1} parent=55 // pred_fallthru
          _
        %p340 = scmp.lt.s32.totalorder %s25, 1
        %s341 = scalar_select %p340, %s25, 1
        %s342 = smul.addr %s341, 8
        %s343 = smul.addr %s342, 8
        %s344 = scalar_lea.vmem %s0, %s343
        %p345 = pneg %p46
        %p346 = pneg %p43
        %p347 = pneg %p67
        %p348 = pneg %p64
        %p349 = pneg %p88
        %p350 = pneg %p85
        %p351 = pneg %p109
        %p352 = pneg %p106
        %p353 = pneg %p130
        %p354 = pneg %p127
        %p355 = pneg %p151
        %p356 = pneg %p148
        %p357 = pneg %p172
        %p358 = pneg %p169
        %p359 = pneg %p193
        %p360 = pneg %p190
        %p361 = pneg %p214
        %p362 = pneg %p211
        %p363 = pneg %p240
        %p364 = pneg %p237
        %s365 = sand.u32 %s227, 1
        %s366 = scalar_lea.sflag [#allocation4], %s365
        %s367 = sand.u32 %s227, 1
        %s368 = smul.addr %s367, 16
        %s369 = scalar_lea.vmem [#allocation8], %s368
        %p370 = scmp.lt.s32.totalorder %s25, 1
        %s371 = scalar_select %p370, %s25, 1
        %s372 = smul.addr %s371, 8
        %s373 = smul.addr %s372, 8
        %s374 = scalar_lea.vmem %s0, %s373
        %v375 = vld [vmem:[%s374] sm:$0xff]
        %v376 = vld [vmem:[%s374 + $0x8] sm:$0xff]
        %v377 = vld [vmem:[%s374 + $0x10] sm:$0xff]
        %v378 = vld [vmem:[%s374 + $0x18] sm:$0xff]
        %v379 = vld [vmem:[%s374 + $0x20] sm:$0xff]
        %v380 = vld [vmem:[%s374 + $0x28] sm:$0xff]
        %v381 = vld [vmem:[%s374 + $0x30] sm:$0xff]
        %v382 = vld [vmem:[%s374 + $0x38] sm:$0xff]
        %v383 = vld [vmem:[%s1] sm:$0xff]
        %v384 = vld [vmem:[%s1 + $0x8] sm:$0xff]
        %v385 = vld [vmem:[%s1 + $0x10] sm:$0xff]
        %v386 = vld [vmem:[%s1 + $0x18] sm:$0xff]
        %v387 = vld [vmem:[%s1 + $0x20] sm:$0xff]
        %v388 = vld [vmem:[%s1 + $0x28] sm:$0xff]
        %v389 = vld [vmem:[%s1 + $0x30] sm:$0xff]
        %v390 = vld [vmem:[%s1 + $0x38] sm:$0xff]
        %v391 = vld [vmem:[%s6] sm:$0x1]
        %v392 = vld [vmem:[#allocation7] sm:$0x7]
        %vm393 = vcmask 523264
        %v395 = vsel %vm393, %v383, 0
        %v398 = vsel %vm393, %v384, 0
        %v401 = vsel %vm393, %v385, 0
        %v404 = vsel %vm393, %v386, 0
        %v407 = vsel %vm393, %v387, 0
        %v410 = vsel %vm393, %v388, 0
        %v413 = vsel %vm393, %v389, 0
        %v416 = vsel %vm393, %v390, 0
        %418 = vmatprep.subr.mxu0 0.0
        %419 = vmatpush1.msra.mxu0 %v375
        %420 = vmatprep.subr.mxu0 0.0
        %421 = vmatpush1.msra.mxu0 %v376
        %422 = vmatprep.subr.mxu0 0.0
        %423 = vmatpush1.msra.mxu0 %v377
        %424 = vmatprep.subr.mxu0 0.0
        %425 = vmatpush1.msra.mxu0 %v378
        %426 = vmatprep.subr.mxu0 0.0
        %427 = vmatpush1.msra.mxu0 %v379
        %428 = vmatprep.subr.mxu0 0.0
        %429 = vmatpush1.msra.mxu0 %v380
        %430 = vmatprep.subr.mxu0 0.0
        %431 = vmatpush1.msra.mxu0 %v381
        %432 = vmatprep.subr.mxu0 0.0
        %433 = vmatpush1.msra.mxu0 %v382
        %434 = vmatprep.subr.mxu0 0.0
        %435 = vmatpush1.msra.mxu0 0.0
        %436 = vmatprep.subr.mxu0 0.0
        %437 = vmatpush1.msra.mxu0 0.0
        %438 = vmatprep.subr.mxu0 0.0
        %439 = vmatpush1.msra.mxu0 0.0
        %440 = vmatprep.subr.mxu0 0.0
        %441 = vmatpush1.msra.mxu0 0.0
        %442 = vmatprep.subr.mxu0 0.0
        %443 = vmatpush1.msra.mxu0 0.0
        %444 = vmatprep.subr.mxu0 0.0
        %445 = vmatpush1.msra.mxu0 0.0
        %446 = vmatprep.subr.mxu0 0.0
        %447 = vmatpush1.msra.mxu0 0.0
        %448 = vmatprep.subr.mxu0 0.0
        %449 = vmatpush1.msra.mxu0 0.0
        %450 = vmatprep.subr.mxu0 0.0
        %451 = vmatpush1.msra.mxu0 0.0
        %452 = vmatprep.subr.mxu0 0.0
        %453 = vmatpush1.msra.mxu0 0.0
        %454 = vmatprep.subr.mxu0 0.0
        %455 = vmatpush1.msra.mxu0 0.0
        %456 = vmatprep.subr.mxu0 0.0
        %457 = vmatpush1.msra.mxu0 0.0
        %458 = vmatprep.subr.mxu0 0.0
        %459 = vmatpush1.msra.mxu0 0.0
        %460 = vmatprep.subr.mxu0 0.0
        %461 = vmatpush1.msra.mxu0 0.0
        %462 = vmatprep.subr.mxu0 0.0
        %463 = vmatpush1.msra.mxu0 0.0
        %464 = vmatprep.subr.mxu0 0.0
        %465 = vmatpush1.msra.mxu0 0.0
        %466 = vmatprep.subr.mxu0 0.0
        %467 = vmatpush1.msra.mxu0 0.0
        %468 = vmatprep.subr.mxu0 0.0
        %469 = vmatpush1.msra.mxu0 0.0
        %470 = vmatprep.subr.mxu0 0.0
        %471 = vmatpush1.msra.mxu0 0.0
        %472 = vmatprep.subr.mxu0 0.0
        %473 = vmatpush1.msra.mxu0 0.0
        %474 = vmatprep.subr.mxu0 0.0
        %475 = vmatpush1.msra.mxu0 0.0
        %476 = vmatprep.subr.mxu0 0.0
        %477 = vmatpush1.msra.mxu0 0.0
        %478 = vmatprep.subr.mxu0 0.0
        %479 = vmatpush1.msra.mxu0 0.0
        %480 = vmatprep.subr.mxu0 0.0
        %481 = vmatpush1.msra.mxu0 0.0
        %482 = vmatprep.mubr.f32.mxu0 0.0
        %483 = vmatmul.mubr.f32.gmra.mrb[0].mxu0 %v395
        %v484 = vpop.f32.mrb[0].mxu0
        %v485 = vadd.f32 0.0, %v484
        %v486 = vpop.f32.mrb[0].mxu0
        %487 = vmatprep.mubr.f32.mxu0 0.0
        %488 = vmatmul.mubr.f32.gmra.mrb[0].mxu0 %v398
        %v489 = vpop.f32.mrb[0].mxu0
        %v490 = vadd.f32 0.0, %v489
        %v491 = vpop.f32.mrb[0].mxu0
        %492 = vmatprep.mubr.f32.mxu0 0.0
        %493 = vmatmul.mubr.f32.gmra.mrb[0].mxu0 %v401
        %v494 = vpop.f32.mrb[0].mxu0
        %v495 = vadd.f32 0.0, %v494
        %v496 = vpop.f32.mrb[0].mxu0
        %497 = vmatprep.mubr.f32.mxu0 0.0
        %498 = vmatmul.mubr.f32.gmra.mrb[0].mxu0 %v404
        %v499 = vpop.f32.mrb[0].mxu0
        %v500 = vadd.f32 0.0, %v499
        %v501 = vpop.f32.mrb[0].mxu0
        %502 = vmatprep.mubr.f32.mxu0 0.0
        %503 = vmatmul.mubr.f32.gmra.mrb[0].mxu0 %v407
        %v504 = vpop.f32.mrb[0].mxu0
        %v505 = vadd.f32 0.0, %v504
        %v506 = vpop.f32.mrb[0].mxu0
        %507 = vmatprep.mubr.f32.mxu0 0.0
        %508 = vmatmul.mubr.f32.gmra.mrb[0].mxu0 %v410
        %v509 = vpop.f32.mrb[0].mxu0
        %v510 = vadd.f32 0.0, %v509
        %v511 = vpop.f32.mrb[0].mxu0
        %512 = vmatprep.mubr.f32.mxu0 0.0
        %513 = vmatmul.mubr.f32.gmra.mrb[0].mxu0 %v413
        %v514 = vpop.f32.mrb[0].mxu0
        %v515 = vadd.f32 0.0, %v514
        %v516 = vpop.f32.mrb[0].mxu0
        %517 = vmatprep.mubr.f32.mxu0 0.0
        %518 = vmatmul.mubr.f32.gmra.mrb[0].mxu0 %v416
        %v519 = vpop.f32.mrb[0].mxu0
        %v520 = vadd.f32 0.0, %v519
        %v521 = vpop.f32.mrb[0].mxu0
        %522 = vdwg.mxu0
        %s523 = scalar_lea.vmem [#allocation7], 4
        %v524 = vld [vmem:[%s523] sm:$0x7]
        %vm525 = vcmask 23552
        %v527 = vsel %vm525, %v485, 0
        %v530 = vsel %vm525, %v490, 0
        %v533 = vsel %vm525, %v495, 0
        %v536 = vsel %vm525, %v500, 0
        %v539 = vsel %vm525, %v505, 0
        %v542 = vsel %vm525, %v510, 0
        %v545 = vsel %vm525, %v515, 0
        %v548 = vsel %vm525, %v520, 0
        %vm550 = vcmask 1042432
        %v552 = vsel %vm550, %v524, 0
        %554 = vmatprep.subr.mxu0 0.0
        %555 = vmatpush1.msra.mxu0 %v552
        %556 = vmatprep.subr.mxu0 0.0
        %557 = vmatpush1.msra.mxu0 0.0
        %558 = vmatprep.subr.mxu0 0.0
        %559 = vmatpush1.msra.mxu0 0.0
        %560 = vmatprep.subr.mxu0 0.0
        %561 = vmatpush1.msra.mxu0 0.0
        %562 = vmatprep.subr.mxu0 0.0
        %563 = vmatpush1.msra.mxu0 0.0
        %564 = vmatprep.subr.mxu0 0.0
        %565 = vmatpush1.msra.mxu0 0.0
        %566 = vmatprep.subr.mxu0 0.0
        %567 = vmatpush1.msra.mxu0 0.0
        %568 = vmatprep.subr.mxu0 0.0
        %569 = vmatpush1.msra.mxu0 0.0
        %570 = vmatprep.subr.mxu0 0.0
        %571 = vmatpush1.msra.mxu0 0.0
        %572 = vmatprep.subr.mxu0 0.0
        %573 = vmatpush1.msra.mxu0 0.0
        %574 = vmatprep.subr.mxu0 0.0
        %575 = vmatpush1.msra.mxu0 0.0
        %576 = vmatprep.subr.mxu0 0.0
        %577 = vmatpush1.msra.mxu0 0.0
        %578 = vmatprep.subr.mxu0 0.0
        %579 = vmatpush1.msra.mxu0 0.0
        %580 = vmatprep.subr.mxu0 0.0
        %581 = vmatpush1.msra.mxu0 0.0
        %582 = vmatprep.subr.mxu0 0.0
        %583 = vmatpush1.msra.mxu0 0.0
        %584 = vmatprep.subr.mxu0 0.0
        %585 = vmatpush1.msra.mxu0 0.0
        %586 = vmatprep.subr.mxu0 0.0
        %587 = vmatpush1.msra.mxu0 0.0
        %588 = vmatprep.subr.mxu0 0.0
        %589 = vmatpush1.msra.mxu0 0.0
        %590 = vmatprep.subr.mxu0 0.0
        %591 = vmatpush1.msra.mxu0 0.0
        %592 = vmatprep.subr.mxu0 0.0
        %593 = vmatpush1.msra.mxu0 0.0
        %594 = vmatprep.subr.mxu0 0.0
        %595 = vmatpush1.msra.mxu0 0.0
        %596 = vmatprep.subr.mxu0 0.0
        %597 = vmatpush1.msra.mxu0 0.0
        %598 = vmatprep.subr.mxu0 0.0
        %599 = vmatpush1.msra.mxu0 0.0
        %600 = vmatprep.subr.mxu0 0.0
        %601 = vmatpush1.msra.mxu0 0.0
        %602 = vmatprep.subr.mxu0 0.0
        %603 = vmatpush1.msra.mxu0 0.0
        %604 = vmatprep.subr.mxu0 0.0
        %605 = vmatpush1.msra.mxu0 0.0
        %606 = vmatprep.subr.mxu0 0.0
        %607 = vmatpush1.msra.mxu0 0.0
        %608 = vmatprep.subr.mxu0 0.0
        %609 = vmatpush1.msra.mxu0 0.0
        %610 = vmatprep.subr.mxu0 0.0
        %611 = vmatpush1.msra.mxu0 0.0
        %612 = vmatprep.subr.mxu0 0.0
        %613 = vmatpush1.msra.mxu0 0.0
        %614 = vmatprep.subr.mxu0 0.0
        %615 = vmatpush1.msra.mxu0 0.0
        %616 = vmatprep.subr.mxu0 0.0
        %617 = vmatpush1.msra.mxu0 0.0
        %618 = vmatprep.mubr.f32.mxu0 0.0
        %619 = vmatmul.mubr.f32.gmra.mrb[0].mxu0 %v527
        %v620 = vpop.f32.mrb[0].mxu0
        %v621 = vadd.f32 0.0, %v620
        %v622 = vpop.f32.mrb[0].mxu0
        %623 = vmatprep.mubr.f32.mxu0 0.0
        %624 = vmatmul.mubr.f32.gmra.mrb[0].mxu0 %v530
        %v625 = vpop.f32.mrb[0].mxu0
        %v626 = vadd.f32 0.0, %v625
        %v627 = vpop.f32.mrb[0].mxu0
        %628 = vmatprep.mubr.f32.mxu0 0.0
        %629 = vmatmul.mubr.f32.gmra.mrb[0].mxu0 %v533
        %v630 = vpop.f32.mrb[0].mxu0
        %v631 = vadd.f32 0.0, %v630
        %v632 = vpop.f32.mrb[0].mxu0
        %633 = vmatprep.mubr.f32.mxu0 0.0
        %634 = vmatmul.mubr.f32.gmra.mrb[0].mxu0 %v536
        %v635 = vpop.f32.mrb[0].mxu0
        %v636 = vadd.f32 0.0, %v635
        %v637 = vpop.f32.mrb[0].mxu0
        %638 = vmatprep.mubr.f32.mxu0 0.0
        %639 = vmatmul.mubr.f32.gmra.mrb[0].mxu0 %v539
        %v640 = vpop.f32.mrb[0].mxu0
        %v641 = vadd.f32 0.0, %v640
        %v642 = vpop.f32.mrb[0].mxu0
        %643 = vmatprep.mubr.f32.mxu0 0.0
        %644 = vmatmul.mubr.f32.gmra.mrb[0].mxu0 %v542
        %v645 = vpop.f32.mrb[0].mxu0
        %v646 = vadd.f32 0.0, %v645
        %v647 = vpop.f32.mrb[0].mxu0
        %648 = vmatprep.mubr.f32.mxu0 0.0
        %649 = vmatmul.mubr.f32.gmra.mrb[0].mxu0 %v545
        %v650 = vpop.f32.mrb[0].mxu0
        %v651 = vadd.f32 0.0, %v650
        %v652 = vpop.f32.mrb[0].mxu0
        %653 = vmatprep.mubr.f32.mxu0 0.0
        %654 = vmatmul.mubr.f32.gmra.mrb[0].mxu0 %v548
        %v655 = vpop.f32.mrb[0].mxu0
        %v656 = vadd.f32 0.0, %v655
        %v657 = vpop.f32.mrb[0].mxu0
        %658 = vdwg.mxu0
        %v660 = vsel %vm525, %v375, 0
        %v663 = vsel %vm525, %v376, 0
        %v666 = vsel %vm525, %v377, 0
        %v669 = vsel %vm525, %v378, 0
        %v672 = vsel %vm525, %v379, 0
        %v675 = vsel %vm525, %v380, 0
        %v678 = vsel %vm525, %v381, 0
        %v681 = vsel %vm525, %v382, 0
        %v684 = vsel %vm550, %v392, 0
        %686 = vmatprep.subr.mxu0 0.0
        %687 = vmatpush1.msra.mxu0 %v684
        %688 = vmatprep.subr.mxu0 0.0
        %689 = vmatpush1.msra.mxu0 0.0
        %690 = vmatprep.subr.mxu0 0.0
        %691 = vmatpush1.msra.mxu0 0.0
        %692 = vmatprep.subr.mxu0 0.0
        %693 = vmatpush1.msra.mxu0 0.0
        %694 = vmatprep.subr.mxu0 0.0
        %695 = vmatpush1.msra.mxu0 0.0
        %696 = vmatprep.subr.mxu0 0.0
        %697 = vmatpush1.msra.mxu0 0.0
        %698 = vmatprep.subr.mxu0 0.0
        %699 = vmatpush1.msra.mxu0 0.0
        %700 = vmatprep.subr.mxu0 0.0
        %701 = vmatpush1.msra.mxu0 0.0
        %702 = vmatprep.subr.mxu0 0.0
        %703 = vmatpush1.msra.mxu0 0.0
        %704 = vmatprep.subr.mxu0 0.0
        %705 = vmatpush1.msra.mxu0 0.0
        %706 = vmatprep.subr.mxu0 0.0
        %707 = vmatpush1.msra.mxu0 0.0
        %708 = vmatprep.subr.mxu0 0.0
        %709 = vmatpush1.msra.mxu0 0.0
        %710 = vmatprep.subr.mxu0 0.0
        %711 = vmatpush1.msra.mxu0 0.0
        %712 = vmatprep.subr.mxu0 0.0
        %713 = vmatpush1.msra.mxu0 0.0
        %714 = vmatprep.subr.mxu0 0.0
        %715 = vmatpush1.msra.mxu0 0.0
        %716 = vmatprep.subr.mxu0 0.0
        %717 = vmatpush1.msra.mxu0 0.0
        %718 = vmatprep.subr.mxu0 0.0
        %719 = vmatpush1.msra.mxu0 0.0
        %720 = vmatprep.subr.mxu0 0.0
        %721 = vmatpush1.msra.mxu0 0.0
        %722 = vmatprep.subr.mxu0 0.0
        %723 = vmatpush1.msra.mxu0 0.0
        %724 = vmatprep.subr.mxu0 0.0
        %725 = vmatpush1.msra.mxu0 0.0
        %726 = vmatprep.subr.mxu0 0.0
        %727 = vmatpush1.msra.mxu0 0.0
        %728 = vmatprep.subr.mxu0 0.0
        %729 = vmatpush1.msra.mxu0 0.0
        %730 = vmatprep.subr.mxu0 0.0
        %731 = vmatpush1.msra.mxu0 0.0
        %732 = vmatprep.subr.mxu0 0.0
        %733 = vmatpush1.msra.mxu0 0.0
        %734 = vmatprep.subr.mxu0 0.0
        %735 = vmatpush1.msra.mxu0 0.0
        %736 = vmatprep.subr.mxu0 0.0
        %737 = vmatpush1.msra.mxu0 0.0
        %738 = vmatprep.subr.mxu0 0.0
        %739 = vmatpush1.msra.mxu0 0.0
        %740 = vmatprep.subr.mxu0 0.0
        %741 = vmatpush1.msra.mxu0 0.0
        %742 = vmatprep.subr.mxu0 0.0
        %743 = vmatpush1.msra.mxu0 0.0
        %744 = vmatprep.subr.mxu0 0.0
        %745 = vmatpush1.msra.mxu0 0.0
        %746 = vmatprep.subr.mxu0 0.0
        %747 = vmatpush1.msra.mxu0 0.0
        %748 = vmatprep.subr.mxu0 0.0
        %749 = vmatpush1.msra.mxu0 0.0
        %750 = vmatprep.mubr.f32.mxu0 0.0
        %751 = vmatmul.mubr.f32.gmra.mrb[0].mxu0 %v660
        %v752 = vpop.f32.mrb[0].mxu0
        %v753 = vadd.f32 %v621, %v752
        %v754 = vpop.f32.mrb[0].mxu0
        %755 = vmatprep.mubr.f32.mxu0 0.0
        %756 = vmatmul.mubr.f32.gmra.mrb[0].mxu0 %v663
        %v757 = vpop.f32.mrb[0].mxu0
        %v758 = vadd.f32 %v626, %v757
        %v759 = vpop.f32.mrb[0].mxu0
        %760 = vmatprep.mubr.f32.mxu0 0.0
        %761 = vmatmul.mubr.f32.gmra.mrb[0].mxu0 %v666
        %v762 = vpop.f32.mrb[0].mxu0
        %v763 = vadd.f32 %v631, %v762
        %v764 = vpop.f32.mrb[0].mxu0
        %765 = vmatprep.mubr.f32.mxu0 0.0
        %766 = vmatmul.mubr.f32.gmra.mrb[0].mxu0 %v669
        %v767 = vpop.f32.mrb[0].mxu0
        %v768 = vadd.f32 %v636, %v767
        %v769 = vpop.f32.mrb[0].mxu0
        %770 = vmatprep.mubr.f32.mxu0 0.0
        %771 = vmatmul.mubr.f32.gmra.mrb[0].mxu0 %v672
        %v772 = vpop.f32.mrb[0].mxu0
        %v773 = vadd.f32 %v641, %v772
        %v774 = vpop.f32.mrb[0].mxu0
        %775 = vmatprep.mubr.f32.mxu0 0.0
        %776 = vmatmul.mubr.f32.gmra.mrb[0].mxu0 %v675
        %v777 = vpop.f32.mrb[0].mxu0
        %v778 = vadd.f32 %v646, %v777
        %v779 = vpop.f32.mrb[0].mxu0
        %780 = vmatprep.mubr.f32.mxu0 0.0
        %781 = vmatmul.mubr.f32.gmra.mrb[0].mxu0 %v678
        %v782 = vpop.f32.mrb[0].mxu0
        %v783 = vadd.f32 %v651, %v782
        %v784 = vpop.f32.mrb[0].mxu0
        %785 = vmatprep.mubr.f32.mxu0 0.0
        %786 = vmatmul.mubr.f32.gmra.mrb[0].mxu0 %v681
        %v787 = vpop.f32.mrb[0].mxu0
        %v788 = vadd.f32 %v656, %v787
        %v789 = vpop.f32.mrb[0].mxu0
        %790 = vdwg.mxu0
        %791 = vmatprep.subr.mxu0 0.0
        %792 = vmatpush1.msra.mxu0 %v485
        %793 = vmatprep.subr.mxu0 0.0
        %794 = vmatpush1.msra.mxu0 %v490
        %795 = vmatprep.subr.mxu0 0.0
        %796 = vmatpush1.msra.mxu0 %v495
        %797 = vmatprep.subr.mxu0 0.0
        %798 = vmatpush1.msra.mxu0 %v500
        %799 = vmatprep.subr.mxu0 0.0
        %800 = vmatpush1.msra.mxu0 %v505
        %801 = vmatprep.subr.mxu0 0.0
        %802 = vmatpush1.msra.mxu0 %v510
        %803 = vmatprep.subr.mxu0 0.0
        %804 = vmatpush1.msra.mxu0 %v515
        %805 = vmatprep.subr.mxu0 0.0
        %806 = vmatpush1.msra.mxu0 %v520
        %807 = vmatprep.subr.mxu0 0.0
        %808 = vmatpush1.msra.mxu0 0.0
        %809 = vmatprep.subr.mxu0 0.0
        %810 = vmatpush1.msra.mxu0 0.0
        %811 = vmatprep.subr.mxu0 0.0
        %812 = vmatpush1.msra.mxu0 0.0
        %813 = vmatprep.subr.mxu0 0.0
        %814 = vmatpush1.msra.mxu0 0.0
        %815 = vmatprep.subr.mxu0 0.0
        %816 = vmatpush1.msra.mxu0 0.0
        %817 = vmatprep.subr.mxu0 0.0
        %818 = vmatpush1.msra.mxu0 0.0
        %819 = vmatprep.subr.mxu0 0.0
        %820 = vmatpush1.msra.mxu0 0.0
        %821 = vmatprep.subr.mxu0 0.0
        %822 = vmatpush1.msra.mxu0 0.0
        %823 = vmatprep.subr.mxu0 0.0
        %824 = vmatpush1.msra.mxu0 0.0
        %825 = vmatprep.subr.mxu0 0.0
        %826 = vmatpush1.msra.mxu0 0.0
        %827 = vmatprep.subr.mxu0 0.0
        %828 = vmatpush1.msra.mxu0 0.0
        %829 = vmatprep.subr.mxu0 0.0
        %830 = vmatpush1.msra.mxu0 0.0
        %831 = vmatprep.subr.mxu0 0.0
        %832 = vmatpush1.msra.mxu0 0.0
        %833 = vmatprep.subr.mxu0 0.0
        %834 = vmatpush1.msra.mxu0 0.0
        %835 = vmatprep.subr.mxu0 0.0
        %836 = vmatpush1.msra.mxu0 0.0
        %837 = vmatprep.subr.mxu0 0.0
        %838 = vmatpush1.msra.mxu0 0.0
        %839 = vmatprep.subr.mxu0 0.0
        %840 = vmatpush1.msra.mxu0 0.0
        %841 = vmatprep.subr.mxu0 0.0
        %842 = vmatpush1.msra.mxu0 0.0
        %843 = vmatprep.subr.mxu0 0.0
        %844 = vmatpush1.msra.mxu0 0.0
        %845 = vmatprep.subr.mxu0 0.0
        %846 = vmatpush1.msra.mxu0 0.0
        %847 = vmatprep.subr.mxu0 0.0
        %848 = vmatpush1.msra.mxu0 0.0
        %849 = vmatprep.subr.mxu0 0.0
        %850 = vmatpush1.msra.mxu0 0.0
        %851 = vmatprep.subr.mxu0 0.0
        %852 = vmatpush1.msra.mxu0 0.0
        %853 = vmatprep.subr.mxu0 0.0
        %854 = vmatpush1.msra.mxu0 0.0
        %855 = vmatprep.mubr.f32.mxu0 0.0
        %856 = vmatmul.mubr.f32.gmra.mrb[0].mxu0 %v395
        %v857 = vpop.f32.mrb[0].mxu0
        %v858 = vadd.f32 0.0, %v857
        %v859 = vpop.f32.mrb[0].mxu0
        %860 = vmatprep.mubr.f32.mxu0 0.0
        %861 = vmatmul.mubr.f32.gmra.mrb[0].mxu0 %v398
        %v862 = vpop.f32.mrb[0].mxu0
        %v863 = vadd.f32 0.0, %v862
        %v864 = vpop.f32.mrb[0].mxu0
        %865 = vmatprep.mubr.f32.mxu0 0.0
        %866 = vmatmul.mubr.f32.gmra.mrb[0].mxu0 %v401
        %v867 = vpop.f32.mrb[0].mxu0
        %v868 = vadd.f32 0.0, %v867
        %v869 = vpop.f32.mrb[0].mxu0
        %870 = vmatprep.mubr.f32.mxu0 0.0
        %871 = vmatmul.mubr.f32.gmra.mrb[0].mxu0 %v404
        %v872 = vpop.f32.mrb[0].mxu0
        %v873 = vadd.f32 0.0, %v872
        %v874 = vpop.f32.mrb[0].mxu0
        %875 = vmatprep.mubr.f32.mxu0 0.0
        %876 = vmatmul.mubr.f32.gmra.mrb[0].mxu0 %v407
        %v877 = vpop.f32.mrb[0].mxu0
        %v878 = vadd.f32 0.0, %v877
        %v879 = vpop.f32.mrb[0].mxu0
        %880 = vmatprep.mubr.f32.mxu0 0.0
        %881 = vmatmul.mubr.f32.gmra.mrb[0].mxu0 %v410
        %v882 = vpop.f32.mrb[0].mxu0
        %v883 = vadd.f32 0.0, %v882
        %v884 = vpop.f32.mrb[0].mxu0
        %885 = vmatprep.mubr.f32.mxu0 0.0
        %886 = vmatmul.mubr.f32.gmra.mrb[0].mxu0 %v413
        %v887 = vpop.f32.mrb[0].mxu0
        %v888 = vadd.f32 0.0, %v887
        %v889 = vpop.f32.mrb[0].mxu0
        %890 = vmatprep.mubr.f32.mxu0 0.0
        %891 = vmatmul.mubr.f32.gmra.mrb[0].mxu0 %v416
        %v892 = vpop.f32.mrb[0].mxu0
        %v893 = vadd.f32 0.0, %v892
        %v894 = vpop.f32.mrb[0].mxu0
        %895 = vdwg.mxu0
        %v896 = vmul.f32 %v858, 2.0
        %v897 = vmul.f32 %v863, 2.0
        %v898 = vmul.f32 %v868, 2.0
        %v899 = vmul.f32 %v873, 2.0
        %v900 = vmul.f32 %v878, 2.0
        %v901 = vmul.f32 %v883, 2.0
        %v902 = vmul.f32 %v888, 2.0
        %v903 = vmul.f32 %v893, 2.0
        %v904 = vsub.f32 %v896, %v375
        %v905 = vsub.f32 %v897, %v376
        %v906 = vsub.f32 %v898, %v377
        %v907 = vsub.f32 %v899, %v378
        %v908 = vsub.f32 %v900, %v379
        %v909 = vsub.f32 %v901, %v380
        %v910 = vsub.f32 %v902, %v381
        %v911 = vsub.f32 %v903, %v382
        %s912 = scalar_lea.vmem [#allocation7], 8
        %v913 = vld [vmem:[%s912] sm:$0x7]
        %v915 = vsel %vm525, %v904, 0
        %v918 = vsel %vm525, %v905, 0
        %v921 = vsel %vm525, %v906, 0
        %v924 = vsel %vm525, %v907, 0
        %v927 = vsel %vm525, %v908, 0
        %v930 = vsel %vm525, %v909, 0
        %v933 = vsel %vm525, %v910, 0
        %v936 = vsel %vm525, %v911, 0
        %v939 = vsel %vm550, %v913, 0
        %941 = vmatprep.subr.mxu0 0.0
        %942 = vmatpush1.msra.mxu0 %v939
        %943 = vmatprep.subr.mxu0 0.0
        %944 = vmatpush1.msra.mxu0 0.0
        %945 = vmatprep.subr.mxu0 0.0
        %946 = vmatpush1.msra.mxu0 0.0
        %947 = vmatprep.subr.mxu0 0.0
        %948 = vmatpush1.msra.mxu0 0.0
        %949 = vmatprep.subr.mxu0 0.0
        %950 = vmatpush1.msra.mxu0 0.0
        %951 = vmatprep.subr.mxu0 0.0
        %952 = vmatpush1.msra.mxu0 0.0
        %953 = vmatprep.subr.mxu0 0.0
        %954 = vmatpush1.msra.mxu0 0.0
        %955 = vmatprep.subr.mxu0 0.0
        %956 = vmatpush1.msra.mxu0 0.0
        %957 = vmatprep.subr.mxu0 0.0
        %958 = vmatpush1.msra.mxu0 0.0
        %959 = vmatprep.subr.mxu0 0.0
        %960 = vmatpush1.msra.mxu0 0.0
        %961 = vmatprep.subr.mxu0 0.0
        %962 = vmatpush1.msra.mxu0 0.0
        %963 = vmatprep.subr.mxu0 0.0
        %964 = vmatpush1.msra.mxu0 0.0
        %965 = vmatprep.subr.mxu0 0.0
        %966 = vmatpush1.msra.mxu0 0.0
        %967 = vmatprep.subr.mxu0 0.0
        %968 = vmatpush1.msra.mxu0 0.0
        %969 = vmatprep.subr.mxu0 0.0
        %970 = vmatpush1.msra.mxu0 0.0
        %971 = vmatprep.subr.mxu0 0.0
        %972 = vmatpush1.msra.mxu0 0.0
        %973 = vmatprep.subr.mxu0 0.0
        %974 = vmatpush1.msra.mxu0 0.0
        %975 = vmatprep.subr.mxu0 0.0
        %976 = vmatpush1.msra.mxu0 0.0
        %977 = vmatprep.subr.mxu0 0.0
        %978 = vmatpush1.msra.mxu0 0.0
        %979 = vmatprep.subr.mxu0 0.0
        %980 = vmatpush1.msra.mxu0 0.0
        %981 = vmatprep.subr.mxu0 0.0
        %982 = vmatpush1.msra.mxu0 0.0
        %983 = vmatprep.subr.mxu0 0.0
        %984 = vmatpush1.msra.mxu0 0.0
        %985 = vmatprep.subr.mxu0 0.0
        %986 = vmatpush1.msra.mxu0 0.0
        %987 = vmatprep.subr.mxu0 0.0
        %988 = vmatpush1.msra.mxu0 0.0
        %989 = vmatprep.subr.mxu0 0.0
        %990 = vmatpush1.msra.mxu0 0.0
        %991 = vmatprep.subr.mxu0 0.0
        %992 = vmatpush1.msra.mxu0 0.0
        %993 = vmatprep.subr.mxu0 0.0
        %994 = vmatpush1.msra.mxu0 0.0
        %995 = vmatprep.subr.mxu0 0.0
        %996 = vmatpush1.msra.mxu0 0.0
        %997 = vmatprep.subr.mxu0 0.0
        %998 = vmatpush1.msra.mxu0 0.0
        %999 = vmatprep.subr.mxu0 0.0
        %1000 = vmatpush1.msra.mxu0 0.0
        %1001 = vmatprep.subr.mxu0 0.0
        %1002 = vmatpush1.msra.mxu0 0.0
        %1003 = vmatprep.subr.mxu0 0.0
        %1004 = vmatpush1.msra.mxu0 0.0
        %1005 = vmatprep.mubr.f32.mxu0 0.0
        %1006 = vmatmul.mubr.f32.gmra.mrb[0].mxu0 %v915
        %v1007 = vpop.f32.mrb[0].mxu0
        %v1008 = vadd.f32 0.0, %v1007
        %v1009 = vpop.f32.mrb[0].mxu0
        %1010 = vmatprep.mubr.f32.mxu0 0.0
        %1011 = vmatmul.mubr.f32.gmra.mrb[0].mxu0 %v918
        %v1012 = vpop.f32.mrb[0].mxu0
        %v1013 = vadd.f32 0.0, %v1012
        %v1014 = vpop.f32.mrb[0].mxu0
        %1015 = vmatprep.mubr.f32.mxu0 0.0
        %1016 = vmatmul.mubr.f32.gmra.mrb[0].mxu0 %v921
        %v1017 = vpop.f32.mrb[0].mxu0
        %v1018 = vadd.f32 0.0, %v1017
        %v1019 = vpop.f32.mrb[0].mxu0
        %1020 = vmatprep.mubr.f32.mxu0 0.0
        %1021 = vmatmul.mubr.f32.gmra.mrb[0].mxu0 %v924
        %v1022 = vpop.f32.mrb[0].mxu0
        %v1023 = vadd.f32 0.0, %v1022
        %v1024 = vpop.f32.mrb[0].mxu0
        %1025 = vmatprep.mubr.f32.mxu0 0.0
        %1026 = vmatmul.mubr.f32.gmra.mrb[0].mxu0 %v927
        %v1027 = vpop.f32.mrb[0].mxu0
        %v1028 = vadd.f32 0.0, %v1027
        %v1029 = vpop.f32.mrb[0].mxu0
        %1030 = vmatprep.mubr.f32.mxu0 0.0
        %1031 = vmatmul.mubr.f32.gmra.mrb[0].mxu0 %v930
        %v1032 = vpop.f32.mrb[0].mxu0
        %v1033 = vadd.f32 0.0, %v1032
        %v1034 = vpop.f32.mrb[0].mxu0
        %1035 = vmatprep.mubr.f32.mxu0 0.0
        %1036 = vmatmul.mubr.f32.gmra.mrb[0].mxu0 %v933
        %v1037 = vpop.f32.mrb[0].mxu0
        %v1038 = vadd.f32 0.0, %v1037
        %v1039 = vpop.f32.mrb[0].mxu0
        %1040 = vmatprep.mubr.f32.mxu0 0.0
        %1041 = vmatmul.mubr.f32.gmra.mrb[0].mxu0 %v936
        %v1042 = vpop.f32.mrb[0].mxu0
        %v1043 = vadd.f32 0.0, %v1042
        %v1044 = vpop.f32.mrb[0].mxu0
        %1045 = vdwg.mxu0
        %v1046 = vadd.f32 %v753, %v1008
        %v1047 = vadd.f32 %v758, %v1013
        %v1048 = vadd.f32 %v763, %v1018
        %v1049 = vadd.f32 %v768, %v1023
        %v1050 = vadd.f32 %v773, %v1028
        %v1051 = vadd.f32 %v778, %v1033
        %v1052 = vadd.f32 %v783, %v1038
        %v1053 = vadd.f32 %v788, %v1043
        %v1055 = vlaneseq
        %v1056 = vshrl.u32 %v1055, 7
        %v1057 = vsub.s32 0, %v1056
        %v1058 = vrot.slane %v391, %v1057
        %v1060 = vadd.f32 %v1046, %v1058
        %v1061 = vadd.f32 %v1047, %v1058
        %v1062 = vadd.f32 %v1048, %v1058
        %v1063 = vadd.f32 %v1049, %v1058
        %v1064 = vadd.f32 %v1050, %v1058
        %v1065 = vadd.f32 %v1051, %v1058
        %v1066 = vadd.f32 %v1052, %v1058
        %v1067 = vadd.f32 %v1053, %v1058
        %v1068 = vld [vmem:[%s3] sm:$0xff]
        %v1069 = vld [vmem:[%s3 + $0x8] sm:$0xff]
        %v1070 = vld [vmem:[%s3 + $0x10] sm:$0xff]
        %v1071 = vld [vmem:[%s3 + $0x18] sm:$0xff]
        %v1073 = vsel %vm393, %v1068, 0
        %v1076 = vsel %vm393, %v1069, 0
        %v1079 = vsel %vm393, %v1070, 0
        %v1082 = vsel %vm393, %v1071, 0
        %1084 = vmatprep.subr.mxu0 0.0
        %1085 = vmatpush1.msra.mxu0 %v1060
        %1086 = vmatprep.subr.mxu0 0.0
        %1087 = vmatpush1.msra.mxu0 %v1061
        %1088 = vmatprep.subr.mxu0 0.0
        %1089 = vmatpush1.msra.mxu0 %v1062
        %1090 = vmatprep.subr.mxu0 0.0
        %1091 = vmatpush1.msra.mxu0 %v1063
        %1092 = vmatprep.subr.mxu0 0.0
        %1093 = vmatpush1.msra.mxu0 %v1064
        %1094 = vmatprep.subr.mxu0 0.0
        %1095 = vmatpush1.msra.mxu0 %v1065
        %1096 = vmatprep.subr.mxu0 0.0
        %1097 = vmatpush1.msra.mxu0 %v1066
        %1098 = vmatprep.subr.mxu0 0.0
        %1099 = vmatpush1.msra.mxu0 %v1067
        %1100 = vmatprep.subr.mxu0 0.0
        %1101 = vmatpush1.msra.mxu0 0.0
        %1102 = vmatprep.subr.mxu0 0.0
        %1103 = vmatpush1.msra.mxu0 0.0
        %1104 = vmatprep.subr.mxu0 0.0
        %1105 = vmatpush1.msra.mxu0 0.0
        %1106 = vmatprep.subr.mxu0 0.0
        %1107 = vmatpush1.msra.mxu0 0.0
        %1108 = vmatprep.subr.mxu0 0.0
        %1109 = vmatpush1.msra.mxu0 0.0
        %1110 = vmatprep.subr.mxu0 0.0
        %1111 = vmatpush1.msra.mxu0 0.0
        %1112 = vmatprep.subr.mxu0 0.0
        %1113 = vmatpush1.msra.mxu0 0.0
        %1114 = vmatprep.subr.mxu0 0.0
        %1115 = vmatpush1.msra.mxu0 0.0
        %1116 = vmatprep.subr.mxu0 0.0
        %1117 = vmatpush1.msra.mxu0 0.0
        %1118 = vmatprep.subr.mxu0 0.0
        %1119 = vmatpush1.msra.mxu0 0.0
        %1120 = vmatprep.subr.mxu0 0.0
        %1121 = vmatpush1.msra.mxu0 0.0
        %1122 = vmatprep.subr.mxu0 0.0
        %1123 = vmatpush1.msra.mxu0 0.0
        %1124 = vmatprep.subr.mxu0 0.0
        %1125 = vmatpush1.msra.mxu0 0.0
        %1126 = vmatprep.subr.mxu0 0.0
        %1127 = vmatpush1.msra.mxu0 0.0
        %1128 = vmatprep.subr.mxu0 0.0
        %1129 = vmatpush1.msra.mxu0 0.0
        %1130 = vmatprep.subr.mxu0 0.0
        %1131 = vmatpush1.msra.mxu0 0.0
        %1132 = vmatprep.subr.mxu0 0.0
        %1133 = vmatpush1.msra.mxu0 0.0
        %1134 = vmatprep.subr.mxu0 0.0
        %1135 = vmatpush1.msra.mxu0 0.0
        %1136 = vmatprep.subr.mxu0 0.0
        %1137 = vmatpush1.msra.mxu0 0.0
        %1138 = vmatprep.subr.mxu0 0.0
        %1139 = vmatpush1.msra.mxu0 0.0
        %1140 = vmatprep.subr.mxu0 0.0
        %1141 = vmatpush1.msra.mxu0 0.0
        %1142 = vmatprep.subr.mxu0 0.0
        %1143 = vmatpush1.msra.mxu0 0.0
        %1144 = vmatprep.subr.mxu0 0.0
        %1145 = vmatpush1.msra.mxu0 0.0
        %1146 = vmatprep.subr.mxu0 0.0
        %1147 = vmatpush1.msra.mxu0 0.0
        %1148 = vmatprep.mubr.f32.mxu0 0.0
        %1149 = vmatmul.mubr.f32.gmra.mrb[0].mxu0 %v1073
        %v1150 = vpop.f32.mrb[0].mxu0
        %v1151 = vadd.f32 0.0, %v1150
        %v1152 = vpop.f32.mrb[0].mxu0
        %1153 = vmatprep.mubr.f32.mxu0 0.0
        %1154 = vmatmul.mubr.f32.gmra.mrb[0].mxu0 %v1076
        %v1155 = vpop.f32.mrb[0].mxu0
        %v1156 = vadd.f32 0.0, %v1155
        %v1157 = vpop.f32.mrb[0].mxu0
        %1158 = vmatprep.mubr.f32.mxu0 0.0
        %1159 = vmatmul.mubr.f32.gmra.mrb[0].mxu0 %v1079
        %v1160 = vpop.f32.mrb[0].mxu0
        %v1161 = vadd.f32 0.0, %v1160
        %v1162 = vpop.f32.mrb[0].mxu0
        %1163 = vmatprep.mubr.f32.mxu0 0.0
        %1164 = vmatmul.mubr.f32.gmra.mrb[0].mxu0 %v1082
        %v1165 = vpop.f32.mrb[0].mxu0
        %v1166 = vadd.f32 0.0, %v1165
        %v1167 = vpop.f32.mrb[0].mxu0
        %1168 = vdwg.mxu0
        %v1169 = vmax.f32 %v1151, 0.0
        %v1170 = vmax.f32 %v1156, 0.0
        %v1171 = vmax.f32 %v1161, 0.0
        %v1172 = vmax.f32 %v1166, 0.0
        %v1173 = vld [vmem:[#allocation2] sm:$0xff]
        %v1174 = vld [vmem:[#allocation2 + $0x8] sm:$0xff]
        %v1175 = vld [vmem:[#allocation2 + $0x10] sm:$0xff]
        %v1176 = vld [vmem:[#allocation2 + $0x18] sm:$0xff]
        %v1177 = vld [vmem:[%s8] sm:$0x1]
        %v1178 = vld [vmem:[%s7] sm:$0xff]
        %v1179 = vld [vmem:[%s7 + $0x8] sm:$0xff]
        %vm1180 = vcmask 261120
        %v1182 = vsel %vm1180, %v1173, 0
        %v1185 = vsel %vm1180, %v1174, 0
        %v1188 = vsel %vm1180, %v1175, 0
        %v1191 = vsel %vm1180, %v1176, 0
        %1193 = vmatprep.subr.mxu0 0.0
        %1194 = vmatpush1.msra.mxu0 %v1169
        %1195 = vmatprep.subr.mxu0 0.0
        %1196 = vmatpush1.msra.mxu0 %v1170
        %1197 = vmatprep.subr.mxu0 0.0
        %1198 = vmatpush1.msra.mxu0 %v1171
        %1199 = vmatprep.subr.mxu0 0.0
        %1200 = vmatpush1.msra.mxu0 %v1172
        %1201 = vmatprep.subr.mxu0 0.0
        %1202 = vmatpush1.msra.mxu0 0.0
        %1203 = vmatprep.subr.mxu0 0.0
        %1204 = vmatpush1.msra.mxu0 0.0
        %1205 = vmatprep.subr.mxu0 0.0
        %1206 = vmatpush1.msra.mxu0 0.0
        %1207 = vmatprep.subr.mxu0 0.0
        %1208 = vmatpush1.msra.mxu0 0.0
        %1209 = vmatprep.subr.mxu0 0.0
        %1210 = vmatpush1.msra.mxu0 0.0
        %1211 = vmatprep.subr.mxu0 0.0
        %1212 = vmatpush1.msra.mxu0 0.0
        %1213 = vmatprep.subr.mxu0 0.0
        %1214 = vmatpush1.msra.mxu0 0.0
        %1215 = vmatprep.subr.mxu0 0.0
        %1216 = vmatpush1.msra.mxu0 0.0
        %1217 = vmatprep.subr.mxu0 0.0
        %1218 = vmatpush1.msra.mxu0 0.0
        %1219 = vmatprep.subr.mxu0 0.0
        %1220 = vmatpush1.msra.mxu0 0.0
        %1221 = vmatprep.subr.mxu0 0.0
        %1222 = vmatpush1.msra.mxu0 0.0
        %1223 = vmatprep.subr.mxu0 0.0
        %1224 = vmatpush1.msra.mxu0 0.0
        %1225 = vmatprep.subr.mxu0 0.0
        %1226 = vmatpush1.msra.mxu0 0.0
        %1227 = vmatprep.subr.mxu0 0.0
        %1228 = vmatpush1.msra.mxu0 0.0
        %1229 = vmatprep.subr.mxu0 0.0
        %1230 = vmatpush1.msra.mxu0 0.0
        %1231 = vmatprep.subr.mxu0 0.0
        %1232 = vmatpush1.msra.mxu0 0.0
        %1233 = vmatprep.subr.mxu0 0.0
        %1234 = vmatpush1.msra.mxu0 0.0
        %1235 = vmatprep.subr.mxu0 0.0
        %1236 = vmatpush1.msra.mxu0 0.0
        %1237 = vmatprep.subr.mxu0 0.0
        %1238 = vmatpush1.msra.mxu0 0.0
        %1239 = vmatprep.subr.mxu0 0.0
        %1240 = vmatpush1.msra.mxu0 0.0
        %1241 = vmatprep.subr.mxu0 0.0
        %1242 = vmatpush1.msra.mxu0 0.0
        %1243 = vmatprep.subr.mxu0 0.0
        %1244 = vmatpush1.msra.mxu0 0.0
        %1245 = vmatprep.subr.mxu0 0.0
        %1246 = vmatpush1.msra.mxu0 0.0
        %1247 = vmatprep.subr.mxu0 0.0
        %1248 = vmatpush1.msra.mxu0 0.0
        %1249 = vmatprep.subr.mxu0 0.0
        %1250 = vmatpush1.msra.mxu0 0.0
        %1251 = vmatprep.subr.mxu0 0.0
        %1252 = vmatpush1.msra.mxu0 0.0
        %1253 = vmatprep.subr.mxu0 0.0
        %1254 = vmatpush1.msra.mxu0 0.0
        %1255 = vmatprep.subr.mxu0 0.0
        %1256 = vmatpush1.msra.mxu0 0.0
        %1257 = vmatprep.mubr.f32.mxu0 0.0
        %1258 = vmatmul.mubr.f32.gmra.mrb[0].mxu0 %v1182
        %v1259 = vpop.f32.mrb[0].mxu0
        %v1260 = vadd.f32 0.0, %v1259
        %v1261 = vpop.f32.mrb[0].mxu0
        %1262 = vmatprep.mubr.f32.mxu0 0.0
        %1263 = vmatmul.mubr.f32.gmra.mrb[0].mxu0 %v1185
        %v1264 = vpop.f32.mrb[0].mxu0
        %v1265 = vadd.f32 0.0, %v1264
        %v1266 = vpop.f32.mrb[0].mxu0
        %1267 = vmatprep.mubr.f32.mxu0 0.0
        %1268 = vmatmul.mubr.f32.gmra.mrb[0].mxu0 %v1188
        %v1269 = vpop.f32.mrb[0].mxu0
        %v1270 = vadd.f32 0.0, %v1269
        %v1271 = vpop.f32.mrb[0].mxu0
        %1272 = vmatprep.mubr.f32.mxu0 0.0
        %1273 = vmatmul.mubr.f32.gmra.mrb[0].mxu0 %v1191
        %v1274 = vpop.f32.mrb[0].mxu0
        %v1275 = vadd.f32 0.0, %v1274
        %v1276 = vpop.f32.mrb[0].mxu0
        %1277 = vdwg.mxu0
        %s1278 = scalar_lea.vmem %s7, 16
        %v1279 = vld [vmem:[%s1278] sm:$0xff]
        %v1280 = vld [vmem:[%s1278 + $0x8] sm:$0xff]
        %vm1281 = vcmask 130048
        %v1283 = vsel %vm1281, %v1260, 0
        %v1286 = vsel %vm1281, %v1265, 0
        %v1289 = vsel %vm1281, %v1270, 0
        %v1292 = vsel %vm1281, %v1275, 0
        %1294 = vmatprep.subr.mxu0 0.0
        %1295 = vmatpush1.msra.mxu0 %v1279
        %1296 = vmatprep.subr.mxu0 0.0
        %1297 = vmatpush1.msra.mxu0 %v1280
        %1298 = vmatprep.subr.mxu0 0.0
        %1299 = vmatpush1.msra.mxu0 0.0
        %1300 = vmatprep.subr.mxu0 0.0
        %1301 = vmatpush1.msra.mxu0 0.0
        %1302 = vmatprep.subr.mxu0 0.0
        %1303 = vmatpush1.msra.mxu0 0.0
        %1304 = vmatprep.subr.mxu0 0.0
        %1305 = vmatpush1.msra.mxu0 0.0
        %1306 = vmatprep.subr.mxu0 0.0
        %1307 = vmatpush1.msra.mxu0 0.0
        %1308 = vmatprep.subr.mxu0 0.0
        %1309 = vmatpush1.msra.mxu0 0.0
        %1310 = vmatprep.subr.mxu0 0.0
        %1311 = vmatpush1.msra.mxu0 0.0
        %1312 = vmatprep.subr.mxu0 0.0
        %1313 = vmatpush1.msra.mxu0 0.0
        %1314 = vmatprep.subr.mxu0 0.0
        %1315 = vmatpush1.msra.mxu0 0.0
        %1316 = vmatprep.subr.mxu0 0.0
        %1317 = vmatpush1.msra.mxu0 0.0
        %1318 = vmatprep.subr.mxu0 0.0
        %1319 = vmatpush1.msra.mxu0 0.0
        %1320 = vmatprep.subr.mxu0 0.0
        %1321 = vmatpush1.msra.mxu0 0.0
        %1322 = vmatprep.subr.mxu0 0.0
        %1323 = vmatpush1.msra.mxu0 0.0
        %1324 = vmatprep.subr.mxu0 0.0
        %1325 = vmatpush1.msra.mxu0 0.0
        %1326 = vmatprep.subr.mxu0 0.0
        %1327 = vmatpush1.msra.mxu0 0.0
        %1328 = vmatprep.subr.mxu0 0.0
        %1329 = vmatpush1.msra.mxu0 0.0
        %1330 = vmatprep.subr.mxu0 0.0
        %1331 = vmatpush1.msra.mxu0 0.0
        %1332 = vmatprep.subr.mxu0 0.0
        %1333 = vmatpush1.msra.mxu0 0.0
        %1334 = vmatprep.subr.mxu0 0.0
        %1335 = vmatpush1.msra.mxu0 0.0
        %1336 = vmatprep.subr.mxu0 0.0
        %1337 = vmatpush1.msra.mxu0 0.0
        %1338 = vmatprep.subr.mxu0 0.0
        %1339 = vmatpush1.msra.mxu0 0.0
        %1340 = vmatprep.subr.mxu0 0.0
        %1341 = vmatpush1.msra.mxu0 0.0
        %1342 = vmatprep.subr.mxu0 0.0
        %1343 = vmatpush1.msra.mxu0 0.0
        %1344 = vmatprep.subr.mxu0 0.0
        %1345 = vmatpush1.msra.mxu0 0.0
        %1346 = vmatprep.subr.mxu0 0.0
        %1347 = vmatpush1.msra.mxu0 0.0
        %1348 = vmatprep.subr.mxu0 0.0
        %1349 = vmatpush1.msra.mxu0 0.0
        %1350 = vmatprep.subr.mxu0 0.0
        %1351 = vmatpush1.msra.mxu0 0.0
        %1352 = vmatprep.subr.mxu0 0.0
        %1353 = vmatpush1.msra.mxu0 0.0
        %1354 = vmatprep.subr.mxu0 0.0
        %1355 = vmatpush1.msra.mxu0 0.0
        %1356 = vmatprep.subr.mxu0 0.0
        %1357 = vmatpush1.msra.mxu0 0.0
        %1358 = vmatprep.mubr.f32.mxu0 0.0
        %1359 = vmatmul.mubr.f32.gmra.mrb[0].mxu0 %v1283
        %v1360 = vpop.f32.mrb[0].mxu0
        %v1361 = vadd.f32 0.0, %v1360
        %v1362 = vpop.f32.mrb[0].mxu0
        %1363 = vmatprep.mubr.f32.mxu0 0.0
        %1364 = vmatmul.mubr.f32.gmra.mrb[0].mxu0 %v1286
        %v1365 = vpop.f32.mrb[0].mxu0
        %v1366 = vadd.f32 0.0, %v1365
        %v1367 = vpop.f32.mrb[0].mxu0
        %1368 = vmatprep.mubr.f32.mxu0 0.0
        %1369 = vmatmul.mubr.f32.gmra.mrb[0].mxu0 %v1289
        %v1370 = vpop.f32.mrb[0].mxu0
        %v1371 = vadd.f32 0.0, %v1370
        %v1372 = vpop.f32.mrb[0].mxu0
        %1373 = vmatprep.mubr.f32.mxu0 0.0
        %1374 = vmatmul.mubr.f32.gmra.mrb[0].mxu0 %v1292
        %v1375 = vpop.f32.mrb[0].mxu0
        %v1376 = vadd.f32 0.0, %v1375
        %v1377 = vpop.f32.mrb[0].mxu0
        %1378 = vdwg.mxu0
        %v1380 = vsel %vm1281, %v1169, 0
        %v1383 = vsel %vm1281, %v1170, 0
        %v1386 = vsel %vm1281, %v1171, 0
        %v1389 = vsel %vm1281, %v1172, 0
        %1391 = vmatprep.subr.mxu0 0.0
        %1392 = vmatpush1.msra.mxu0 %v1178
        %1393 = vmatprep.subr.mxu0 0.0
        %1394 = vmatpush1.msra.mxu0 %v1179
        %1395 = vmatprep.subr.mxu0 0.0
        %1396 = vmatpush1.msra.mxu0 0.0
        %1397 = vmatprep.subr.mxu0 0.0
        %1398 = vmatpush1.msra.mxu0 0.0
        %1399 = vmatprep.subr.mxu0 0.0
        %1400 = vmatpush1.msra.mxu0 0.0
        %1401 = vmatprep.subr.mxu0 0.0
        %1402 = vmatpush1.msra.mxu0 0.0
        %1403 = vmatprep.subr.mxu0 0.0
        %1404 = vmatpush1.msra.mxu0 0.0
        %1405 = vmatprep.subr.mxu0 0.0
        %1406 = vmatpush1.msra.mxu0 0.0
        %1407 = vmatprep.subr.mxu0 0.0
        %1408 = vmatpush1.msra.mxu0 0.0
        %1409 = vmatprep.subr.mxu0 0.0
        %1410 = vmatpush1.msra.mxu0 0.0
        %1411 = vmatprep.subr.mxu0 0.0
        %1412 = vmatpush1.msra.mxu0 0.0
        %1413 = vmatprep.subr.mxu0 0.0
        %1414 = vmatpush1.msra.mxu0 0.0
        %1415 = vmatprep.subr.mxu0 0.0
        %1416 = vmatpush1.msra.mxu0 0.0
        %1417 = vmatprep.subr.mxu0 0.0
        %1418 = vmatpush1.msra.mxu0 0.0
        %1419 = vmatprep.subr.mxu0 0.0
        %1420 = vmatpush1.msra.mxu0 0.0
        %1421 = vmatprep.subr.mxu0 0.0
        %1422 = vmatpush1.msra.mxu0 0.0
        %1423 = vmatprep.subr.mxu0 0.0
        %1424 = vmatpush1.msra.mxu0 0.0
        %1425 = vmatprep.subr.mxu0 0.0
        %1426 = vmatpush1.msra.mxu0 0.0
        %1427 = vmatprep.subr.mxu0 0.0
        %1428 = vmatpush1.msra.mxu0 0.0
        %1429 = vmatprep.subr.mxu0 0.0
        %1430 = vmatpush1.msra.mxu0 0.0
        %1431 = vmatprep.subr.mxu0 0.0
        %1432 = vmatpush1.msra.mxu0 0.0
        %1433 = vmatprep.subr.mxu0 0.0
        %1434 = vmatpush1.msra.mxu0 0.0
        %1435 = vmatprep.subr.mxu0 0.0
        %1436 = vmatpush1.msra.mxu0 0.0
        %1437 = vmatprep.subr.mxu0 0.0
        %1438 = vmatpush1.msra.mxu0 0.0
        %1439 = vmatprep.subr.mxu0 0.0
        %1440 = vmatpush1.msra.mxu0 0.0
        %1441 = vmatprep.subr.mxu0 0.0
        %1442 = vmatpush1.msra.mxu0 0.0
        %1443 = vmatprep.subr.mxu0 0.0
        %1444 = vmatpush1.msra.mxu0 0.0
        %1445 = vmatprep.subr.mxu0 0.0
        %1446 = vmatpush1.msra.mxu0 0.0
        %1447 = vmatprep.subr.mxu0 0.0
        %1448 = vmatpush1.msra.mxu0 0.0
        %1449 = vmatprep.subr.mxu0 0.0
        %1450 = vmatpush1.msra.mxu0 0.0
        %1451 = vmatprep.subr.mxu0 0.0
        %1452 = vmatpush1.msra.mxu0 0.0
        %1453 = vmatprep.subr.mxu0 0.0
        %1454 = vmatpush1.msra.mxu0 0.0
        %1455 = vmatprep.mubr.f32.mxu0 0.0
        %1456 = vmatmul.mubr.f32.gmra.mrb[0].mxu0 %v1380
        %v1457 = vpop.f32.mrb[0].mxu0
        %v1458 = vadd.f32 %v1361, %v1457
        %v1459 = vpop.f32.mrb[0].mxu0
        %1460 = vmatprep.mubr.f32.mxu0 0.0
        %1461 = vmatmul.mubr.f32.gmra.mrb[0].mxu0 %v1383
        %v1462 = vpop.f32.mrb[0].mxu0
        %v1463 = vadd.f32 %v1366, %v1462
        %v1464 = vpop.f32.mrb[0].mxu0
        %1465 = vmatprep.mubr.f32.mxu0 0.0
        %1466 = vmatmul.mubr.f32.gmra.mrb[0].mxu0 %v1386
        %v1467 = vpop.f32.mrb[0].mxu0
        %v1468 = vadd.f32 %v1371, %v1467
        %v1469 = vpop.f32.mrb[0].mxu0
        %1470 = vmatprep.mubr.f32.mxu0 0.0
        %1471 = vmatmul.mubr.f32.gmra.mrb[0].mxu0 %v1389
        %v1472 = vpop.f32.mrb[0].mxu0
        %v1473 = vadd.f32 %v1376, %v1472
        %v1474 = vpop.f32.mrb[0].mxu0
        %1475 = vdwg.mxu0
        %1476 = vmatprep.subr.mxu0 0.0
        %1477 = vmatpush1.msra.mxu0 %v1260
        %1478 = vmatprep.subr.mxu0 0.0
        %1479 = vmatpush1.msra.mxu0 %v1265
        %1480 = vmatprep.subr.mxu0 0.0
        %1481 = vmatpush1.msra.mxu0 %v1270
        %1482 = vmatprep.subr.mxu0 0.0
        %1483 = vmatpush1.msra.mxu0 %v1275
        %1484 = vmatprep.subr.mxu0 0.0
        %1485 = vmatpush1.msra.mxu0 0.0
        %1486 = vmatprep.subr.mxu0 0.0
        %1487 = vmatpush1.msra.mxu0 0.0
        %1488 = vmatprep.subr.mxu0 0.0
        %1489 = vmatpush1.msra.mxu0 0.0
        %1490 = vmatprep.subr.mxu0 0.0
        %1491 = vmatpush1.msra.mxu0 0.0
        %1492 = vmatprep.subr.mxu0 0.0
        %1493 = vmatpush1.msra.mxu0 0.0
        %1494 = vmatprep.subr.mxu0 0.0
        %1495 = vmatpush1.msra.mxu0 0.0
        %1496 = vmatprep.subr.mxu0 0.0
        %1497 = vmatpush1.msra.mxu0 0.0
        %1498 = vmatprep.subr.mxu0 0.0
        %1499 = vmatpush1.msra.mxu0 0.0
        %1500 = vmatprep.subr.mxu0 0.0
        %1501 = vmatpush1.msra.mxu0 0.0
        %1502 = vmatprep.subr.mxu0 0.0
        %1503 = vmatpush1.msra.mxu0 0.0
        %1504 = vmatprep.subr.mxu0 0.0
        %1505 = vmatpush1.msra.mxu0 0.0
        %1506 = vmatprep.subr.mxu0 0.0
        %1507 = vmatpush1.msra.mxu0 0.0
        %1508 = vmatprep.subr.mxu0 0.0
        %1509 = vmatpush1.msra.mxu0 0.0
        %1510 = vmatprep.subr.mxu0 0.0
        %1511 = vmatpush1.msra.mxu0 0.0
        %1512 = vmatprep.subr.mxu0 0.0
        %1513 = vmatpush1.msra.mxu0 0.0
        %1514 = vmatprep.subr.mxu0 0.0
        %1515 = vmatpush1.msra.mxu0 0.0
        %1516 = vmatprep.subr.mxu0 0.0
        %1517 = vmatpush1.msra.mxu0 0.0
        %1518 = vmatprep.subr.mxu0 0.0
        %1519 = vmatpush1.msra.mxu0 0.0
        %1520 = vmatprep.subr.mxu0 0.0
        %1521 = vmatpush1.msra.mxu0 0.0
        %1522 = vmatprep.subr.mxu0 0.0
        %1523 = vmatpush1.msra.mxu0 0.0
        %1524 = vmatprep.subr.mxu0 0.0
        %1525 = vmatpush1.msra.mxu0 0.0
        %1526 = vmatprep.subr.mxu0 0.0
        %1527 = vmatpush1.msra.mxu0 0.0
        %1528 = vmatprep.subr.mxu0 0.0
        %1529 = vmatpush1.msra.mxu0 0.0
        %1530 = vmatprep.subr.mxu0 0.0
        %1531 = vmatpush1.msra.mxu0 0.0
        %1532 = vmatprep.subr.mxu0 0.0
        %1533 = vmatpush1.msra.mxu0 0.0
        %1534 = vmatprep.subr.mxu0 0.0
        %1535 = vmatpush1.msra.mxu0 0.0
        %1536 = vmatprep.subr.mxu0 0.0
        %1537 = vmatpush1.msra.mxu0 0.0
        %1538 = vmatprep.subr.mxu0 0.0
        %1539 = vmatpush1.msra.mxu0 0.0
        %1540 = vmatprep.mubr.f32.mxu0 0.0
        %1541 = vmatmul.mubr.f32.gmra.mrb[0].mxu0 %v1182
        %v1542 = vpop.f32.mrb[0].mxu0
        %v1543 = vadd.f32 0.0, %v1542
        %v1544 = vpop.f32.mrb[0].mxu0
        %1545 = vmatprep.mubr.f32.mxu0 0.0
        %1546 = vmatmul.mubr.f32.gmra.mrb[0].mxu0 %v1185
        %v1547 = vpop.f32.mrb[0].mxu0
        %v1548 = vadd.f32 0.0, %v1547
        %v1549 = vpop.f32.mrb[0].mxu0
        %1550 = vmatprep.mubr.f32.mxu0 0.0
        %1551 = vmatmul.mubr.f32.gmra.mrb[0].mxu0 %v1188
        %v1552 = vpop.f32.mrb[0].mxu0
        %v1553 = vadd.f32 0.0, %v1552
        %v1554 = vpop.f32.mrb[0].mxu0
        %1555 = vmatprep.mubr.f32.mxu0 0.0
        %1556 = vmatmul.mubr.f32.gmra.mrb[0].mxu0 %v1191
        %v1557 = vpop.f32.mrb[0].mxu0
        %v1558 = vadd.f32 0.0, %v1557
        %v1559 = vpop.f32.mrb[0].mxu0
        %1560 = vdwg.mxu0
        %v1561 = vmul.f32 %v1543, 2.0
        %v1562 = vmul.f32 %v1548, 2.0
        %v1563 = vmul.f32 %v1553, 2.0
        %v1564 = vmul.f32 %v1558, 2.0
        %v1565 = vsub.f32 %v1561, %v1169
        %v1566 = vsub.f32 %v1562, %v1170
        %v1567 = vsub.f32 %v1563, %v1171
        %v1568 = vsub.f32 %v1564, %v1172
        %s1569 = scalar_lea.vmem %s7, 32
        %v1570 = vld [vmem:[%s1569] sm:$0xff]
        %v1571 = vld [vmem:[%s1569 + $0x8] sm:$0xff]
        %v1573 = vsel %vm1281, %v1565, 0
        %v1576 = vsel %vm1281, %v1566, 0
        %v1579 = vsel %vm1281, %v1567, 0
        %v1582 = vsel %vm1281, %v1568, 0
        %1584 = vmatprep.subr.mxu0 0.0
        %1585 = vmatpush1.msra.mxu0 %v1570
        %1586 = vmatprep.subr.mxu0 0.0
        %1587 = vmatpush1.msra.mxu0 %v1571
        %1588 = vmatprep.subr.mxu0 0.0
        %1589 = vmatpush1.msra.mxu0 0.0
        %1590 = vmatprep.subr.mxu0 0.0
        %1591 = vmatpush1.msra.mxu0 0.0
        %1592 = vmatprep.subr.mxu0 0.0
        %1593 = vmatpush1.msra.mxu0 0.0
        %1594 = vmatprep.subr.mxu0 0.0
        %1595 = vmatpush1.msra.mxu0 0.0
        %1596 = vmatprep.subr.mxu0 0.0
        %1597 = vmatpush1.msra.mxu0 0.0
        %1598 = vmatprep.subr.mxu0 0.0
        %1599 = vmatpush1.msra.mxu0 0.0
        %1600 = vmatprep.subr.mxu0 0.0
        %1601 = vmatpush1.msra.mxu0 0.0
        %1602 = vmatprep.subr.mxu0 0.0
        %1603 = vmatpush1.msra.mxu0 0.0
        %1604 = vmatprep.subr.mxu0 0.0
        %1605 = vmatpush1.msra.mxu0 0.0
        %1606 = vmatprep.subr.mxu0 0.0
        %1607 = vmatpush1.msra.mxu0 0.0
        %1608 = vmatprep.subr.mxu0 0.0
        %1609 = vmatpush1.msra.mxu0 0.0
        %1610 = vmatprep.subr.mxu0 0.0
        %1611 = vmatpush1.msra.mxu0 0.0
        %1612 = vmatprep.subr.mxu0 0.0
        %1613 = vmatpush1.msra.mxu0 0.0
        %1614 = vmatprep.subr.mxu0 0.0
        %1615 = vmatpush1.msra.mxu0 0.0
        %1616 = vmatprep.subr.mxu0 0.0
        %1617 = vmatpush1.msra.mxu0 0.0
        %1618 = vmatprep.subr.mxu0 0.0
        %1619 = vmatpush1.msra.mxu0 0.0
        %1620 = vmatprep.subr.mxu0 0.0
        %1621 = vmatpush1.msra.mxu0 0.0
        %1622 = vmatprep.subr.mxu0 0.0
        %1623 = vmatpush1.msra.mxu0 0.0
        %1624 = vmatprep.subr.mxu0 0.0
        %1625 = vmatpush1.msra.mxu0 0.0
        %1626 = vmatprep.subr.mxu0 0.0
        %1627 = vmatpush1.msra.mxu0 0.0
        %1628 = vmatprep.subr.mxu0 0.0
        %1629 = vmatpush1.msra.mxu0 0.0
        %1630 = vmatprep.subr.mxu0 0.0
        %1631 = vmatpush1.msra.mxu0 0.0
        %1632 = vmatprep.subr.mxu0 0.0
        %1633 = vmatpush1.msra.mxu0 0.0
        %1634 = vmatprep.subr.mxu0 0.0
        %1635 = vmatpush1.msra.mxu0 0.0
        %1636 = vmatprep.subr.mxu0 0.0
        %1637 = vmatpush1.msra.mxu0 0.0
        %1638 = vmatprep.subr.mxu0 0.0
        %1639 = vmatpush1.msra.mxu0 0.0
        %1640 = vmatprep.subr.mxu0 0.0
        %1641 = vmatpush1.msra.mxu0 0.0
        %1642 = vmatprep.subr.mxu0 0.0
        %1643 = vmatpush1.msra.mxu0 0.0
        %1644 = vmatprep.subr.mxu0 0.0
        %1645 = vmatpush1.msra.mxu0 0.0
        %1646 = vmatprep.subr.mxu0 0.0
        %1647 = vmatpush1.msra.mxu0 0.0
        %1648 = vmatprep.mubr.f32.mxu0 0.0
        %1649 = vmatmul.mubr.f32.gmra.mrb[0].mxu0 %v1573
        %v1650 = vpop.f32.mrb[0].mxu0
        %v1651 = vadd.f32 0.0, %v1650
        %v1652 = vpop.f32.mrb[0].mxu0
        %1653 = vmatprep.mubr.f32.mxu0 0.0
        %1654 = vmatmul.mubr.f32.gmra.mrb[0].mxu0 %v1576
        %v1655 = vpop.f32.mrb[0].mxu0
        %v1656 = vadd.f32 0.0, %v1655
        %v1657 = vpop.f32.mrb[0].mxu0
        %1658 = vmatprep.mubr.f32.mxu0 0.0
        %1659 = vmatmul.mubr.f32.gmra.mrb[0].mxu0 %v1579
        %v1660 = vpop.f32.mrb[0].mxu0
        %v1661 = vadd.f32 0.0, %v1660
        %v1662 = vpop.f32.mrb[0].mxu0
        %1663 = vmatprep.mubr.f32.mxu0 0.0
        %1664 = vmatmul.mubr.f32.gmra.mrb[0].mxu0 %v1582
        %v1665 = vpop.f32.mrb[0].mxu0
        %v1666 = vadd.f32 0.0, %v1665
        %v1667 = vpop.f32.mrb[0].mxu0
        %1668 = vdwg.mxu0
        %v1669 = vadd.f32 %v1458, %v1651
        %v1670 = vadd.f32 %v1463, %v1656
        %v1671 = vadd.f32 %v1468, %v1661
        %v1672 = vadd.f32 %v1473, %v1666
        %v1674 = vlaneseq
        %v1675 = vshrl.u32 %v1674, 7
        %v1676 = vsub.s32 0, %v1675
        %v1677 = vrot.slane %v1177, %v1676
        %v1679 = vadd.f32 %v1669, %v1677
        %v1680 = vadd.f32 %v1670, %v1677
        %v1681 = vadd.f32 %v1671, %v1677
        %v1682 = vadd.f32 %v1672, %v1677
        %v1683 = vld [vmem:[#allocation5] sm:$0xff]
        %v1684 = vld [vmem:[#allocation5 + $0x8] sm:$0xff]
        %v1686 = vsel %vm1180, %v1683, 0
        %v1689 = vsel %vm1180, %v1684, 0
        %1691 = vmatprep.subr.mxu0 0.0
        %1692 = vmatpush1.msra.mxu0 %v1679
        %1693 = vmatprep.subr.mxu0 0.0
        %1694 = vmatpush1.msra.mxu0 %v1680
        %1695 = vmatprep.subr.mxu0 0.0
        %1696 = vmatpush1.msra.mxu0 %v1681
        %1697 = vmatprep.subr.mxu0 0.0
        %1698 = vmatpush1.msra.mxu0 %v1682
        %1699 = vmatprep.subr.mxu0 0.0
        %1700 = vmatpush1.msra.mxu0 0.0
        %1701 = vmatprep.subr.mxu0 0.0
        %1702 = vmatpush1.msra.mxu0 0.0
        %1703 = vmatprep.subr.mxu0 0.0
        %1704 = vmatpush1.msra.mxu0 0.0
        %1705 = vmatprep.subr.mxu0 0.0
        %1706 = vmatpush1.msra.mxu0 0.0
        %1707 = vmatprep.subr.mxu0 0.0
        %1708 = vmatpush1.msra.mxu0 0.0
        %1709 = vmatprep.subr.mxu0 0.0
        %1710 = vmatpush1.msra.mxu0 0.0
        %1711 = vmatprep.subr.mxu0 0.0
        %1712 = vmatpush1.msra.mxu0 0.0
        %1713 = vmatprep.subr.mxu0 0.0
        %1714 = vmatpush1.msra.mxu0 0.0
        %1715 = vmatprep.subr.mxu0 0.0
        %1716 = vmatpush1.msra.mxu0 0.0
        %1717 = vmatprep.subr.mxu0 0.0
        %1718 = vmatpush1.msra.mxu0 0.0
        %1719 = vmatprep.subr.mxu0 0.0
        %1720 = vmatpush1.msra.mxu0 0.0
        %1721 = vmatprep.subr.mxu0 0.0
        %1722 = vmatpush1.msra.mxu0 0.0
        %1723 = vmatprep.subr.mxu0 0.0
        %1724 = vmatpush1.msra.mxu0 0.0
        %1725 = vmatprep.subr.mxu0 0.0
        %1726 = vmatpush1.msra.mxu0 0.0
        %1727 = vmatprep.subr.mxu0 0.0
        %1728 = vmatpush1.msra.mxu0 0.0
        %1729 = vmatprep.subr.mxu0 0.0
        %1730 = vmatpush1.msra.mxu0 0.0
        %1731 = vmatprep.subr.mxu0 0.0
        %1732 = vmatpush1.msra.mxu0 0.0
        %1733 = vmatprep.subr.mxu0 0.0
        %1734 = vmatpush1.msra.mxu0 0.0
        %1735 = vmatprep.subr.mxu0 0.0
        %1736 = vmatpush1.msra.mxu0 0.0
        %1737 = vmatprep.subr.mxu0 0.0
        %1738 = vmatpush1.msra.mxu0 0.0
        %1739 = vmatprep.subr.mxu0 0.0
        %1740 = vmatpush1.msra.mxu0 0.0
        %1741 = vmatprep.subr.mxu0 0.0
        %1742 = vmatpush1.msra.mxu0 0.0
        %1743 = vmatprep.subr.mxu0 0.0
        %1744 = vmatpush1.msra.mxu0 0.0
        %1745 = vmatprep.subr.mxu0 0.0
        %1746 = vmatpush1.msra.mxu0 0.0
        %1747 = vmatprep.subr.mxu0 0.0
        %1748 = vmatpush1.msra.mxu0 0.0
        %1749 = vmatprep.subr.mxu0 0.0
        %1750 = vmatpush1.msra.mxu0 0.0
        %1751 = vmatprep.subr.mxu0 0.0
        %1752 = vmatpush1.msra.mxu0 0.0
        %1753 = vmatprep.subr.mxu0 0.0
        %1754 = vmatpush1.msra.mxu0 0.0
        %1755 = vmatprep.mubr.f32.mxu0 0.0
        %1756 = vmatmul.mubr.f32.gmra.mrb[0].mxu0 %v1686
        %v1757 = vpop.f32.mrb[0].mxu0
        %v1758 = vadd.f32 0.0, %v1757
        %v1759 = vpop.f32.mrb[0].mxu0
        %1760 = vmatprep.mubr.f32.mxu0 0.0
        %1761 = vmatmul.mubr.f32.gmra.mrb[0].mxu0 %v1689
        %v1762 = vpop.f32.mrb[0].mxu0
        %v1763 = vadd.f32 0.0, %v1762
        %v1764 = vpop.f32.mrb[0].mxu0
        %1765 = vdwg.mxu0
        %v1766 = vmax.f32 %v1758, 0.0
        %v1767 = vmax.f32 %v1763, 0.0
        %1768 = vst.msk [vmem:[%s369] sm:$0xff] %vm1180, %v1766
        %1769 = vst.msk [vmem:[%s369 + $0x8] sm:$0xff] %vm1180, %v1767
        %s1770 = sand.u32 %s227, 1
        %s1771 = scalar_lea.sflag [#allocation4], %s1770
        %s1772 = sand.u32 %s227, 1
        %s1773 = smul.addr %s1772, 16
        %s1774 = scalar_lea.vmem [#allocation8], %s1773
        // Predicated region
        $region69: #{tpu_custom_call.1} parent=55 // pred_check
          %p1775 = pneg %p237
        $region70: #{tpu_custom_call.1} parent=55 // pred_check_branch
          %1777 = sbr.rel (%p1775) target = $region72
        $region71: #{tpu_custom_call.1} parent=55 // pred_region
          %s1779 = ssub.s32 256, 256
          %1780 = vsyncadd %s1771, %s1779
          %s1781 = smul.addr %s25, 2
          %s1782 = smul.addr %s1781, 128
          %s1783 = scalar_lea.hbm %s9, %s1782
          %s1784 = sshll.u32 %s1774, 4
          %s1785 = int_to_ptr.vmem [resolvable:$true] %s1784
          %1790 = dma.vmem_to_hbm [thread:$0]  %s1785, 256, %s1783, %s1771, 128, 128, 8
        $region72: #{tpu_custom_call.1} parent=55 // pred_fallthru
          _
      $region56: #{tpu_custom_call.1} parent=5 // pred_fallthru
        _
      %p1791 = scmp.le.s32.totalorder 2, %s20
      // Predicated region
      $region73: #{tpu_custom_call.1} parent=5 // pred_check
        %p1792 = pneg %p1791
      $region74: #{tpu_custom_call.1} parent=5 // pred_check_branch
        %1794 = sbr.rel (%p1792) target = $region76
      $region75: #{tpu_custom_call.1} parent=5 // pred_region
        %s1795 = ssub.s32 %s20, 2
        // Predicated region
        $region77: #{tpu_custom_call.1} parent=75 // pred_check
          %p1796 = pneg %p243
        $region78: #{tpu_custom_call.1} parent=75 // pred_check_branch
          %1798 = sbr.rel (%p1796) target = $region80
        $region79: #{tpu_custom_call.1} parent=75 // pred_region
          %s1799 = sand.u32 %s228, 1
          %s1800 = scalar_lea.sflag [#allocation4], %s1799
          %s1801 = sand.u32 %s228, 1
          %s1802 = smul.addr %s1801, 16
          %s1803 = scalar_lea.vmem [#allocation8], %s1802
          %1804 = dma.done %s1800, 256
        $region80: #{tpu_custom_call.1} parent=75 // pred_fallthru
          _
      $region76: #{tpu_custom_call.1} parent=5 // pred_fallthru
        _
    $region6: #{tpu_custom_call.1} parent=1 // loop_footer
      %s24 = sadd.s32 1, %s20
    $region7: #{tpu_custom_call.1} parent=1 // loop_footer_branch
      %19 = sbr.rel target = $region3
    $region8: #{tpu_custom_call.1} parent=1 // loop_exit
      _
    %1805 = vsyncpa [#allocation3], 1
    %s1806 = scalar_lea.sflag [#allocation3], 1
    %1807 = vsyncpa %s1806, 1
    %1808 = vsyncpa [#allocation6], 1
    %1809 = vsyncpa [#allocation4], 1
    %s1810 = scalar_lea.sflag [#allocation4], 1
    %1811 = vsyncpa %s1810, 1

</llo_original>
